<compile_context>
chip_gen: v5e
topology: v5e:2x2
jax: 0.10.0
libtpu: 0.0.40
codegen_flags: <defaults>
</compile_context>

<pallas_src>
import functools
import math

import jax
import jax.numpy as jnp
from jax import lax
from jax.experimental import pallas as pl
from jax.experimental.pallas import tpu as pltpu

LN_EPS = 1e-5


def _layernorm(x, w, b):
    mu = jnp.mean(x, axis=-1, keepdims=True)
    var = jnp.mean((x - mu) ** 2, axis=-1, keepdims=True)
    return (x - mu) * lax.rsqrt(var + LN_EPS) * w + b


def _new_gelu(x):
    c = math.sqrt(2.0 / math.pi)
    return 0.5 * x * (1.0 + jnp.tanh(c * (x + 0.044715 * x * x * x)))


def block_kernel(
    x_ref,                                   # (1, T, C)   f32, full sequence
    ln1_w_ref, ln1_b_ref,                    # (1, C)      f32
    wq_ref, bq_ref,                          # (H, C, hd) bf16, (H, 1, hd) f32
    wk_ref, bk_ref,                          # (H, C, hd) bf16, (H, 1, hd) f32
    wv_ref, bv_ref,                          # (H, C, hd) bf16, (H, 1, hd) f32
    wo_ref, bo_ref,                          # (H, hd, C) bf16, (1, C) f32
    ln2_w_ref, ln2_b_ref,                    # (1, C)      f32
    w_fc_ref, b_fc_ref,                      # (C, 4C) bf16, (1, 4C) f32
    w_mp_ref, b_mp_ref,                      # (4C, C) bf16, (1, C) f32
    out_ref,                                 # (1, TQ, C)
    *, n_head, q_tile,
):
    T = x_ref.shape[1]
    C = x_ref.shape[2]
    hd = C // n_head
    TQ = q_tile
    scale = 1.0 / math.sqrt(hd)

    q_start = pl.multiple_of(pl.program_id(1) * TQ, TQ)

    # Residual-stream rows handled by this query tile, and full sequence for K/V.
    x_q = x_ref[0, pl.ds(q_start, TQ), :]            # (TQ, C) f32
    x_full = x_ref[0]                                # (T, C)  f32

    # ---- ln_1 (f32 statistics), bf16 activations into the MXU ----
    h_q = _layernorm(x_q, ln1_w_ref[0], ln1_b_ref[0]).astype(jnp.bfloat16)
    h_kv = _layernorm(x_full, ln1_w_ref[0], ln1_b_ref[0]).astype(jnp.bfloat16)

    # Causal mask built once per tile (global query rows vs key columns), f32 fill.
    rows = q_start + lax.broadcasted_iota(jnp.int32, (TQ, T), 0)
    cols = lax.broadcasted_iota(jnp.int32, (TQ, T), 1)
    causal = cols <= rows

    # ---- causal self-attention ----
    # y @ W_proj == sum_h y_h @ W_proj[h*hd:(h+1)*hd, :]  -> accumulate lane-dense,
    # no scratch round-trip, no narrow masked stores.
    attn_acc = jnp.zeros((TQ, C), jnp.float32)
    for h in range(n_head):
        qh = jnp.dot(h_q, wq_ref[h], preferred_element_type=jnp.float32) + bq_ref[h]
        kh = jnp.dot(h_kv, wk_ref[h], preferred_element_type=jnp.float32) + bk_ref[h]
        vh = jnp.dot(h_kv, wv_ref[h], preferred_element_type=jnp.float32) + bv_ref[h]

        s = lax.dot_general(
            qh.astype(jnp.bfloat16), kh.astype(jnp.bfloat16),
            dimension_numbers=(((1,), (1,)), ((), ())),
            preferred_element_type=jnp.float32) * scale            # (TQ, T) f32
        s = jnp.where(causal, s, -1e30)
        m = jnp.max(s, axis=-1, keepdims=True)
        p = jnp.exp(s - m)
        l = jnp.sum(p, axis=-1, keepdims=True)
        # attn_dropout: identity (eval mode)
        oh = jnp.dot(p.astype(jnp.bfloat16), vh.astype(jnp.bfloat16),
                     preferred_element_type=jnp.float32)            # (TQ, hd)
        oh = oh * pl.reciprocal(l, approx=True)   # fold softmax norm post-PV (EUP slot)
        attn_acc = attn_acc + jnp.dot(oh.astype(jnp.bfloat16), wo_ref[h],
                                      preferred_element_type=jnp.float32)

    # resid_dropout: identity (eval mode)
    x1 = x_q + attn_acc + bo_ref[0]

    # ---- ln_2 + MLP (NewGELU) ----
    h2 = _layernorm(x1, ln2_w_ref[0], ln2_b_ref[0])
    fc = jnp.dot(h2.astype(jnp.bfloat16), w_fc_ref[...],
                 preferred_element_type=jnp.float32) + b_fc_ref[0]
    act = _new_gelu(fc)                           # tanh stays f32 (v5e: no bf16 EUP)
    mlp = jnp.dot(act.astype(jnp.bfloat16), w_mp_ref[...],
                  preferred_element_type=jnp.float32) + b_mp_ref[0]
    # mlp dropout: identity (eval mode)
    out_ref[0] = (x1 + mlp).astype(out_ref.dtype)


def gpt_block(x, params, n_head):
    (ln1_w, ln1_b, w_attn, b_attn, w_aproj, b_aproj,
     ln2_w, ln2_b, w_fc, b_fc, w_mproj, b_mproj) = params
    B, T, C = x.shape
    assert C % n_head == 0
    hd = C // n_head
    # weights must be PRE-TRANSPOSED to (in, out) relative to PyTorch's (out, in)
    assert w_attn.shape == (C, 3 * C) and w_aproj.shape == (C, C)
    assert w_fc.shape == (C, 4 * C) and w_mproj.shape == (4 * C, C)

    # Per-head weight re-layout (plain JAX, outside the kernel) + bf16 for the MXU.
    def per_head_in(w):      # (C, C) -> (n_head, C, hd)
        return w.reshape(C, n_head, hd).transpose(1, 0, 2).astype(jnp.bfloat16)

    wq = per_head_in(w_attn[:, 0 * C:1 * C])
    wk = per_head_in(w_attn[:, 1 * C:2 * C])
    wv = per_head_in(w_attn[:, 2 * C:3 * C])
    bq = b_attn[0, 0 * C:1 * C].reshape(n_head, 1, hd).astype(jnp.float32)
    bk = b_attn[0, 1 * C:2 * C].reshape(n_head, 1, hd).astype(jnp.float32)
    bv = b_attn[0, 2 * C:3 * C].reshape(n_head, 1, hd).astype(jnp.float32)
    wo = w_aproj.reshape(n_head, hd, C).astype(jnp.bfloat16)   # rows grouped by head
    bo = b_aproj.astype(jnp.float32)
    w_fc_b = w_fc.astype(jnp.bfloat16)
    w_mp_b = w_mproj.astype(jnp.bfloat16)

    kernel_args = (x, ln1_w, ln1_b, wq, bq, wk, bk, wv, bv, wo, bo,
                   ln2_w, ln2_b, w_fc_b, b_fc, w_mp_b, b_mproj)

    # Query-tile size: whole sequence when small, 256-row tiles otherwise.
    TQ = T if (T <= 256 or T % 256 != 0) else 256
    grid = (B, T // TQ)

    def resident(a):          # full-array block, constant index -> stays resident in VMEM
        nd = a.ndim
        return pl.BlockSpec(a.shape, lambda b, q, _nd=nd: (0,) * _nd)

    in_specs = [pl.BlockSpec((1, T, C), lambda b, q: (b, 0, 0))]
    in_specs += [resident(a) for a in kernel_args[1:]]
    out_specs = pl.BlockSpec((1, TQ, C), lambda b, q: (b, q, 0))

    flops = B * (24 * T * C * C + 4 * T * T * C)
    transcendentals = B * (n_head * T * T + 4 * T * C + 4 * T)
    bytes_accessed = 2 * B * T * C * 4 + 12 * C * C * 2 + 12 * C * 4

    kernel = functools.partial(block_kernel, n_head=n_head, q_tile=TQ)
    return pl.pallas_call(
        kernel,
        out_shape=jax.ShapeDtypeStruct((B, T, C), x.dtype),
        grid_spec=pltpu.PrefetchScalarGridSpec(
            num_scalar_prefetch=0,
            grid=grid,
            in_specs=in_specs,
            out_specs=out_specs,
        ),
        compiler_params=pltpu.CompilerParams(
            dimension_semantics=("parallel", "parallel"),
            vmem_limit_bytes=64 * 1024 * 1024,
        ),
        cost_estimate=pl.CostEstimate(
            flops=int(flops),
            transcendentals=int(transcendentals),
            bytes_accessed=int(bytes_accessed)),
    )(*kernel_args)


# ---- pure-JAX reference (mirrors the PyTorch module in eval mode, all f32) ----
def ref_block(x, params, n_head):
    (ln1_w, ln1_b, w_attn, b_attn, w_aproj, b_aproj,
     ln2_w, ln2_b, w_fc, b_fc, w_mproj, b_mproj) = params
    B, T, C = x.shape
    hd = C // n_head

    h = _layernorm(x, ln1_w[0], ln1_b[0])
    qkv = h @ w_attn + b_attn[0]
    q, k, v = jnp.split(qkv, 3, axis=-1)
    q = q.reshape(B, T, n_head, hd).transpose(0, 2, 1, 3)
    k = k.reshape(B, T, n_head, hd).transpose(0, 2, 1, 3)
    v = v.reshape(B, T, n_head, hd).transpose(0, 2, 1, 3)
    att = (q @ jnp.swapaxes(k, -2, -1)) / math.sqrt(hd)
    mask = jnp.tril(jnp.ones((T, T), bool))
    att = jnp.where(mask[None, None], att, -1e30)
    att = jax.nn.softmax(att, axis=-1)
    y = (att @ v).transpose(0, 2, 1, 3).reshape(B, T, C)
    x1 = x + (y @ w_aproj + b_aproj[0])

    h2 = _layernorm(x1, ln2_w[0], ln2_b[0])
    fc = h2 @ w_fc + b_fc[0]
    act = _new_gelu(fc)
    return x1 + (act @ w_mproj + b_mproj[0])


if __name__ == "__main__":
    # config: n_embd=32, n_head=4, block_size=8, dropouts=0 (eval)
    B, T, C, n_head = 2, 8, 32, 4

    key = jax.random.PRNGKey(0)
    keys = jax.random.split(key, 8)

    x = jax.random.normal(keys[0], (B, T, C), jnp.float32)

    def lin(k, fan_in, fan_out):
        # deterministic synthetic init; weights returned as (in, out)
        w = 0.02 * jax.random.normal(k, (fan_in, fan_out), jnp.float32)
        b = jnp.zeros((1, fan_out), jnp.float32)
        return w, b

    ln1_w = jnp.ones((1, C), jnp.float32)
    ln1_b = jnp.zeros((1, C), jnp.float32)
    ln2_w = jnp.ones((1, C), jnp.float32)
    ln2_b = jnp.zeros((1, C), jnp.float32)
    w_attn, b_attn = lin(keys[1], C, 3 * C)
    w_aproj, b_aproj = lin(keys[2], C, C)
    w_fc, b_fc = lin(keys[3], C, 4 * C)
    w_mproj, b_mproj = lin(keys[4], 4 * C, C)

    params = [ln1_w, ln1_b, w_attn, b_attn, w_aproj, b_aproj,
              ln2_w, ln2_b, w_fc, b_fc, w_mproj, b_mproj]

    out = gpt_block(x, params, n_head)
    out = jax.block_until_ready(out)

    ref = ref_block(x, params, n_head)
    assert out.shape == (B, T, C)
    # kernel runs its matmuls in bf16 (f32 accumulation); compare with bf16-level tolerance
    assert jnp.allclose(out, ref, atol=2e-2, rtol=2e-2), (
        f"max err {jnp.max(jnp.abs(out - ref))}")

    print("KERNEL_OK")
</pallas_src>

<mosaic_0001>
module attributes {stable_mosaic.version = 11 : i64} {
  func.func @block_kernel(%arg0: i32, %arg1: i32, %arg2: memref<1x8x32xf32, #tpu.memory_space<vmem>>, %arg3: memref<1x32xf32, #tpu.memory_space<vmem>>, %arg4: memref<1x32xf32, #tpu.memory_space<vmem>>, %arg5: memref<4x32x8xbf16, #tpu.memory_space<vmem>>, %arg6: memref<4x1x8xf32, #tpu.memory_space<vmem>>, %arg7: memref<4x32x8xbf16, #tpu.memory_space<vmem>>, %arg8: memref<4x1x8xf32, #tpu.memory_space<vmem>>, %arg9: memref<4x32x8xbf16, #tpu.memory_space<vmem>>, %arg10: memref<4x1x8xf32, #tpu.memory_space<vmem>>, %arg11: memref<4x8x32xbf16, #tpu.memory_space<vmem>>, %arg12: memref<1x32xf32, #tpu.memory_space<vmem>>, %arg13: memref<1x32xf32, #tpu.memory_space<vmem>>, %arg14: memref<1x32xf32, #tpu.memory_space<vmem>>, %arg15: memref<32x128xbf16, #tpu.memory_space<vmem>>, %arg16: memref<1x128xf32, #tpu.memory_space<vmem>>, %arg17: memref<128x32xbf16, #tpu.memory_space<vmem>>, %arg18: memref<1x32xf32, #tpu.memory_space<vmem>>, %arg19: memref<1x8x32xf32, #tpu.memory_space<vmem>>) attributes {dimension_semantics = [#tpu.dimension_semantics<parallel>, #tpu.dimension_semantics<parallel>], iteration_bounds = array<i64: 2, 1>, scalar_prefetch = 0 : i64, scratch_operands = 0 : i64, tpu.core_type = #tpu.core_type<tc>, window_params = [{transform_indices = @transform_0, window_bounds = array<i64: 1, 8, 32>}, {pipeline_mode = #tpu.pipeline_mode<synchronous>, transform_indices = @transform_1, window_bounds = array<i64: 1, 32>}, {pipeline_mode = #tpu.pipeline_mode<synchronous>, transform_indices = @transform_2, window_bounds = array<i64: 1, 32>}, {pipeline_mode = #tpu.pipeline_mode<synchronous>, transform_indices = @transform_3, window_bounds = array<i64: 4, 32, 8>}, {pipeline_mode = #tpu.pipeline_mode<synchronous>, transform_indices = @transform_4, window_bounds = array<i64: 4, 1, 8>}, {pipeline_mode = #tpu.pipeline_mode<synchronous>, transform_indices = @transform_5, window_bounds = array<i64: 4, 32, 8>}, {pipeline_mode = #tpu.pipeline_mode<synchronous>, transform_indices = @transform_6, window_bounds = array<i64: 4, 1, 8>}, {pipeline_mode = #tpu.pipeline_mode<synchronous>, transform_indices = @transform_7, window_bounds = array<i64: 4, 32, 8>}, {pipeline_mode = #tpu.pipeline_mode<synchronous>, transform_indices = @transform_8, window_bounds = array<i64: 4, 1, 8>}, {pipeline_mode = #tpu.pipeline_mode<synchronous>, transform_indices = @transform_9, window_bounds = array<i64: 4, 8, 32>}, {pipeline_mode = #tpu.pipeline_mode<synchronous>, transform_indices = @transform_10, window_bounds = array<i64: 1, 32>}, {pipeline_mode = #tpu.pipeline_mode<synchronous>, transform_indices = @transform_11, window_bounds = array<i64: 1, 32>}, {pipeline_mode = #tpu.pipeline_mode<synchronous>, transform_indices = @transform_12, window_bounds = array<i64: 1, 32>}, {pipeline_mode = #tpu.pipeline_mode<synchronous>, transform_indices = @transform_13, window_bounds = array<i64: 32, 128>}, {pipeline_mode = #tpu.pipeline_mode<synchronous>, transform_indices = @transform_14, window_bounds = array<i64: 1, 128>}, {pipeline_mode = #tpu.pipeline_mode<synchronous>, transform_indices = @transform_15, window_bounds = array<i64: 128, 32>}, {pipeline_mode = #tpu.pipeline_mode<synchronous>, transform_indices = @transform_16, window_bounds = array<i64: 1, 32>}, {transform_indices = @transform_17, window_bounds = array<i64: 1, 8, 32>}]} {
    %c8_i32 = arith.constant 8 : i32
    %0 = arith.muli %arg1, %c8_i32 : i32
    %1 = tpu.assume_multiple %0, 8 : i32
    %c0 = arith.constant 0 : index
    %2 = arith.index_cast %1 : i32 to index
    %c0_0 = arith.constant 0 : index
    %3 = vector.load %arg2[%c0, %2, %c0_0] : memref<1x8x32xf32, #tpu.memory_space<vmem>>, vector<1x8x32xf32>
    %4 = vector.shape_cast %3 : vector<1x8x32xf32> to vector<8x32xf32>
    %c0_1 = arith.constant 0 : index
    %c0_2 = arith.constant 0 : index
    %c0_3 = arith.constant 0 : index
    %5 = vector.load %arg2[%c0_1, %c0_2, %c0_3] : memref<1x8x32xf32, #tpu.memory_space<vmem>>, vector<1x8x32xf32>
    %6 = vector.shape_cast %5 : vector<1x8x32xf32> to vector<8x32xf32>
    %c0_4 = arith.constant 0 : index
    %c0_5 = arith.constant 0 : index
    %7 = vector.load %arg3[%c0_4, %c0_5] : memref<1x32xf32, #tpu.memory_space<vmem>>, vector<1x32xf32>
    %8 = vector.shape_cast %7 : vector<1x32xf32> to vector<32xf32>
    %c0_6 = arith.constant 0 : index
    %c0_7 = arith.constant 0 : index
    %9 = vector.load %arg4[%c0_6, %c0_7] : memref<1x32xf32, #tpu.memory_space<vmem>>, vector<1x32xf32>
    %10 = vector.shape_cast %9 : vector<1x32xf32> to vector<32xf32>
    %cst = arith.constant dense<0.000000e+00> : vector<8xf32>
    %11 = vector.multi_reduction <add>, %4, %cst [1] : vector<8x32xf32> to vector<8xf32>
    %12 = vector.shape_cast %11 : vector<8xf32> to vector<8x1xf32>
    %cst_8 = arith.constant 3.200000e+01 : f32
    %13 = vector.broadcast %cst_8 : f32 to vector<8x1xf32>
    %14 = arith.divf %12, %13 : vector<8x1xf32>
    %15 = vector.broadcast %14 : vector<8x1xf32> to vector<8x32xf32>
    %16 = arith.subf %4, %15 : vector<8x32xf32>
    %17 = arith.mulf %16, %16 : vector<8x32xf32>
    %cst_9 = arith.constant dense<0.000000e+00> : vector<8xf32>
    %18 = vector.multi_reduction <add>, %17, %cst_9 [1] : vector<8x32xf32> to vector<8xf32>
    %19 = vector.shape_cast %18 : vector<8xf32> to vector<8x1xf32>
    %cst_10 = arith.constant 3.200000e+01 : f32
    %20 = vector.broadcast %cst_10 : f32 to vector<8x1xf32>
    %21 = arith.divf %19, %20 : vector<8x1xf32>
    %22 = vector.broadcast %14 : vector<8x1xf32> to vector<8x32xf32>
    %23 = arith.subf %4, %22 : vector<8x32xf32>
    %cst_11 = arith.constant 9.99999974E-6 : f32
    %24 = vector.broadcast %cst_11 : f32 to vector<8x1xf32>
    %25 = arith.addf %21, %24 : vector<8x1xf32>
    %26 = math.rsqrt %25 : vector<8x1xf32>
    %27 = vector.broadcast %26 : vector<8x1xf32> to vector<8x32xf32>
    %28 = arith.mulf %23, %27 : vector<8x32xf32>
    %29 = vector.shape_cast %8 : vector<32xf32> to vector<1x32xf32>
    %30 = vector.broadcast %29 : vector<1x32xf32> to vector<8x32xf32>
    %31 = arith.mulf %28, %30 : vector<8x32xf32>
    %32 = vector.shape_cast %10 : vector<32xf32> to vector<1x32xf32>
    %33 = vector.broadcast %32 : vector<1x32xf32> to vector<8x32xf32>
    %34 = arith.addf %31, %33 : vector<8x32xf32>
    %35 = arith.truncf %34 : vector<8x32xf32> to vector<8x32xbf16>
    %c0_12 = arith.constant 0 : index
    %c0_13 = arith.constant 0 : index
    %36 = vector.load %arg3[%c0_12, %c0_13] : memref<1x32xf32, #tpu.memory_space<vmem>>, vector<1x32xf32>
    %37 = vector.shape_cast %36 : vector<1x32xf32> to vector<32xf32>
    %c0_14 = arith.constant 0 : index
    %c0_15 = arith.constant 0 : index
    %38 = vector.load %arg4[%c0_14, %c0_15] : memref<1x32xf32, #tpu.memory_space<vmem>>, vector<1x32xf32>
    %39 = vector.shape_cast %38 : vector<1x32xf32> to vector<32xf32>
    %cst_16 = arith.constant dense<0.000000e+00> : vector<8xf32>
    %40 = vector.multi_reduction <add>, %6, %cst_16 [1] : vector<8x32xf32> to vector<8xf32>
    %41 = vector.shape_cast %40 : vector<8xf32> to vector<8x1xf32>
    %cst_17 = arith.constant 3.200000e+01 : f32
    %42 = vector.broadcast %cst_17 : f32 to vector<8x1xf32>
    %43 = arith.divf %41, %42 : vector<8x1xf32>
    %44 = vector.broadcast %43 : vector<8x1xf32> to vector<8x32xf32>
    %45 = arith.subf %6, %44 : vector<8x32xf32>
    %46 = arith.mulf %45, %45 : vector<8x32xf32>
    %cst_18 = arith.constant dense<0.000000e+00> : vector<8xf32>
    %47 = vector.multi_reduction <add>, %46, %cst_18 [1] : vector<8x32xf32> to vector<8xf32>
    %48 = vector.shape_cast %47 : vector<8xf32> to vector<8x1xf32>
    %cst_19 = arith.constant 3.200000e+01 : f32
    %49 = vector.broadcast %cst_19 : f32 to vector<8x1xf32>
    %50 = arith.divf %48, %49 : vector<8x1xf32>
    %51 = vector.broadcast %43 : vector<8x1xf32> to vector<8x32xf32>
    %52 = arith.subf %6, %51 : vector<8x32xf32>
    %cst_20 = arith.constant 9.99999974E-6 : f32
    %53 = vector.broadcast %cst_20 : f32 to vector<8x1xf32>
    %54 = arith.addf %50, %53 : vector<8x1xf32>
    %55 = math.rsqrt %54 : vector<8x1xf32>
    %56 = vector.broadcast %55 : vector<8x1xf32> to vector<8x32xf32>
    %57 = arith.mulf %52, %56 : vector<8x32xf32>
    %58 = vector.shape_cast %37 : vector<32xf32> to vector<1x32xf32>
    %59 = vector.broadcast %58 : vector<1x32xf32> to vector<8x32xf32>
    %60 = arith.mulf %57, %59 : vector<8x32xf32>
    %61 = vector.shape_cast %39 : vector<32xf32> to vector<1x32xf32>
    %62 = vector.broadcast %61 : vector<1x32xf32> to vector<8x32xf32>
    %63 = arith.addf %60, %62 : vector<8x32xf32>
    %64 = arith.truncf %63 : vector<8x32xf32> to vector<8x32xbf16>
    %65 = tpu.iota {dimensions = array<i32: 0>} : vector<8x8xi32>
    %66 = vector.broadcast %1 : i32 to vector<8x8xi32>
    %67 = arith.addi %66, %65 : vector<8x8xi32>
    %68 = tpu.iota {dimensions = array<i32: 1>} : vector<8x8xi32>
    %69 = arith.cmpi sle, %68, %67 : vector<8x8xi32>
    %cst_21 = arith.constant 0.000000e+00 : f32
    %70 = vector.broadcast %cst_21 : f32 to vector<8x32xf32>
    %c0_22 = arith.constant 0 : index
    %c0_23 = arith.constant 0 : index
    %c0_24 = arith.constant 0 : index
    %71 = vector.load %arg5[%c0_22, %c0_23, %c0_24] : memref<4x32x8xbf16, #tpu.memory_space<vmem>>, vector<1x32x8xbf16>
    %72 = vector.shape_cast %71 : vector<1x32x8xbf16> to vector<32x8xbf16>
    %cst_25 = arith.constant dense<0.000000e+00> : vector<8x8xf32>
    %73 = tpu.matmul %35, %72, %cst_25 {dimension_numbers = #tpu.dot_dimension_numbers<[1], [0], [0], [1], [0, 0, 1, 1], [], []>} : vector<8x32xbf16>, vector<32x8xbf16>, vector<8x8xf32> -> vector<8x8xf32>
    %c0_26 = arith.constant 0 : index
    %c0_27 = arith.constant 0 : index
    %c0_28 = arith.constant 0 : index
    %74 = vector.load %arg6[%c0_26, %c0_27, %c0_28] : memref<4x1x8xf32, #tpu.memory_space<vmem>>, vector<1x1x8xf32>
    %75 = vector.shape_cast %74 : vector<1x1x8xf32> to vector<1x8xf32>
    %76 = vector.broadcast %75 : vector<1x8xf32> to vector<8x8xf32>
    %77 = arith.addf %73, %76 : vector<8x8xf32>
    %c0_29 = arith.constant 0 : index
    %c0_30 = arith.constant 0 : index
    %c0_31 = arith.constant 0 : index
    %78 = vector.load %arg7[%c0_29, %c0_30, %c0_31] : memref<4x32x8xbf16, #tpu.memory_space<vmem>>, vector<1x32x8xbf16>
    %79 = vector.shape_cast %78 : vector<1x32x8xbf16> to vector<32x8xbf16>
    %cst_32 = arith.constant dense<0.000000e+00> : vector<8x8xf32>
    %80 = tpu.matmul %64, %79, %cst_32 {dimension_numbers = #tpu.dot_dimension_numbers<[1], [0], [0], [1], [0, 0, 1, 1], [], []>} : vector<8x32xbf16>, vector<32x8xbf16>, vector<8x8xf32> -> vector<8x8xf32>
    %c0_33 = arith.constant 0 : index
    %c0_34 = arith.constant 0 : index
    %c0_35 = arith.constant 0 : index
    %81 = vector.load %arg8[%c0_33, %c0_34, %c0_35] : memref<4x1x8xf32, #tpu.memory_space<vmem>>, vector<1x1x8xf32>
    %82 = vector.shape_cast %81 : vector<1x1x8xf32> to vector<1x8xf32>
    %83 = vector.broadcast %82 : vector<1x8xf32> to vector<8x8xf32>
    %84 = arith.addf %80, %83 : vector<8x8xf32>
    %c0_36 = arith.constant 0 : index
    %c0_37 = arith.constant 0 : index
    %c0_38 = arith.constant 0 : index
    %85 = vector.load %arg9[%c0_36, %c0_37, %c0_38] : memref<4x32x8xbf16, #tpu.memory_space<vmem>>, vector<1x32x8xbf16>
    %86 = vector.shape_cast %85 : vector<1x32x8xbf16> to vector<32x8xbf16>
    %cst_39 = arith.constant dense<0.000000e+00> : vector<8x8xf32>
    %87 = tpu.matmul %64, %86, %cst_39 {dimension_numbers = #tpu.dot_dimension_numbers<[1], [0], [0], [1], [0, 0, 1, 1], [], []>} : vector<8x32xbf16>, vector<32x8xbf16>, vector<8x8xf32> -> vector<8x8xf32>
    %c0_40 = arith.constant 0 : index
    %c0_41 = arith.constant 0 : index
    %c0_42 = arith.constant 0 : index
    %88 = vector.load %arg10[%c0_40, %c0_41, %c0_42] : memref<4x1x8xf32, #tpu.memory_space<vmem>>, vector<1x1x8xf32>
    %89 = vector.shape_cast %88 : vector<1x1x8xf32> to vector<1x8xf32>
    %90 = vector.broadcast %89 : vector<1x8xf32> to vector<8x8xf32>
    %91 = arith.addf %87, %90 : vector<8x8xf32>
    %92 = arith.truncf %77 : vector<8x8xf32> to vector<8x8xbf16>
    %93 = arith.truncf %84 : vector<8x8xf32> to vector<8x8xbf16>
    %cst_43 = arith.constant dense<0.000000e+00> : vector<8x8xf32>
    %94 = tpu.matmul %92, %93, %cst_43 {dimension_numbers = #tpu.dot_dimension_numbers<[1], [1], [0], [0], [0, 0, 1, 0], [], []>} : vector<8x8xbf16>, vector<8x8xbf16>, vector<8x8xf32> -> vector<8x8xf32>
    %cst_44 = arith.constant 0.353553385 : f32
    %95 = vector.broadcast %cst_44 : f32 to vector<8x8xf32>
    %96 = arith.mulf %94, %95 : vector<8x8xf32>
    %cst_45 = arith.constant -1.000000e+30 : f32
    %97 = vector.broadcast %cst_45 : f32 to vector<8x8xf32>
    %98 = arith.select %69, %96, %97 : vector<8x8xi1>, vector<8x8xf32>
    %cst_46 = arith.constant dense<0xFF800000> : vector<8xf32>
    %99 = vector.multi_reduction <maximumf>, %98, %cst_46 [1] : vector<8x8xf32> to vector<8xf32>
    %100 = vector.shape_cast %99 : vector<8xf32> to vector<8x1xf32>
    %101 = vector.broadcast %100 : vector<8x1xf32> to vector<8x8xf32>
    %102 = arith.subf %98, %101 : vector<8x8xf32>
    %103 = math.exp %102 : vector<8x8xf32>
    %cst_47 = arith.constant dense<0.000000e+00> : vector<8xf32>
    %104 = vector.multi_reduction <add>, %103, %cst_47 [1] : vector<8x8xf32> to vector<8xf32>
    %105 = vector.shape_cast %104 : vector<8xf32> to vector<8x1xf32>
    %106 = arith.truncf %103 : vector<8x8xf32> to vector<8x8xbf16>
    %107 = arith.truncf %91 : vector<8x8xf32> to vector<8x8xbf16>
    %cst_48 = arith.constant dense<0.000000e+00> : vector<8x8xf32>
    %108 = tpu.matmul %106, %107, %cst_48 {dimension_numbers = #tpu.dot_dimension_numbers<[1], [0], [0], [1], [0, 0, 1, 1], [], []>} : vector<8x8xbf16>, vector<8x8xbf16>, vector<8x8xf32> -> vector<8x8xf32>
    %109 = tpu.reciprocal %105 {approx = true} : vector<8x1xf32> -> vector<8x1xf32>
    %110 = vector.broadcast %109 : vector<8x1xf32> to vector<8x8xf32>
    %111 = arith.mulf %108, %110 : vector<8x8xf32>
    %112 = arith.truncf %111 : vector<8x8xf32> to vector<8x8xbf16>
    %c0_49 = arith.constant 0 : index
    %c0_50 = arith.constant 0 : index
    %c0_51 = arith.constant 0 : index
    %113 = vector.load %arg11[%c0_49, %c0_50, %c0_51] : memref<4x8x32xbf16, #tpu.memory_space<vmem>>, vector<1x8x32xbf16>
    %114 = vector.shape_cast %113 : vector<1x8x32xbf16> to vector<8x32xbf16>
    %cst_52 = arith.constant dense<0.000000e+00> : vector<8x32xf32>
    %115 = tpu.matmul %112, %114, %cst_52 {dimension_numbers = #tpu.dot_dimension_numbers<[1], [0], [0], [1], [0, 0, 1, 1], [], []>} : vector<8x8xbf16>, vector<8x32xbf16>, vector<8x32xf32> -> vector<8x32xf32>
    %116 = arith.addf %70, %115 : vector<8x32xf32>
    %c1 = arith.constant 1 : index
    %c0_53 = arith.constant 0 : index
    %c0_54 = arith.constant 0 : index
    %117 = vector.load %arg5[%c1, %c0_53, %c0_54] : memref<4x32x8xbf16, #tpu.memory_space<vmem>>, vector<1x32x8xbf16>
    %118 = vector.shape_cast %117 : vector<1x32x8xbf16> to vector<32x8xbf16>
    %cst_55 = arith.constant dense<0.000000e+00> : vector<8x8xf32>
    %119 = tpu.matmul %35, %118, %cst_55 {dimension_numbers = #tpu.dot_dimension_numbers<[1], [0], [0], [1], [0, 0, 1, 1], [], []>} : vector<8x32xbf16>, vector<32x8xbf16>, vector<8x8xf32> -> vector<8x8xf32>
    %c1_56 = arith.constant 1 : index
    %c0_57 = arith.constant 0 : index
    %c0_58 = arith.constant 0 : index
    %120 = vector.load %arg6[%c1_56, %c0_57, %c0_58] : memref<4x1x8xf32, #tpu.memory_space<vmem>>, vector<1x1x8xf32>
    %121 = vector.shape_cast %120 : vector<1x1x8xf32> to vector<1x8xf32>
    %122 = vector.broadcast %121 : vector<1x8xf32> to vector<8x8xf32>
    %123 = arith.addf %119, %122 : vector<8x8xf32>
    %c1_59 = arith.constant 1 : index
    %c0_60 = arith.constant 0 : index
    %c0_61 = arith.constant 0 : index
    %124 = vector.load %arg7[%c1_59, %c0_60, %c0_61] : memref<4x32x8xbf16, #tpu.memory_space<vmem>>, vector<1x32x8xbf16>
    %125 = vector.shape_cast %124 : vector<1x32x8xbf16> to vector<32x8xbf16>
    %cst_62 = arith.constant dense<0.000000e+00> : vector<8x8xf32>
    %126 = tpu.matmul %64, %125, %cst_62 {dimension_numbers = #tpu.dot_dimension_numbers<[1], [0], [0], [1], [0, 0, 1, 1], [], []>} : vector<8x32xbf16>, vector<32x8xbf16>, vector<8x8xf32> -> vector<8x8xf32>
    %c1_63 = arith.constant 1 : index
    %c0_64 = arith.constant 0 : index
    %c0_65 = arith.constant 0 : index
    %127 = vector.load %arg8[%c1_63, %c0_64, %c0_65] : memref<4x1x8xf32, #tpu.memory_space<vmem>>, vector<1x1x8xf32>
    %128 = vector.shape_cast %127 : vector<1x1x8xf32> to vector<1x8xf32>
    %129 = vector.broadcast %128 : vector<1x8xf32> to vector<8x8xf32>
    %130 = arith.addf %126, %129 : vector<8x8xf32>
    %c1_66 = arith.constant 1 : index
    %c0_67 = arith.constant 0 : index
    %c0_68 = arith.constant 0 : index
    %131 = vector.load %arg9[%c1_66, %c0_67, %c0_68] : memref<4x32x8xbf16, #tpu.memory_space<vmem>>, vector<1x32x8xbf16>
    %132 = vector.shape_cast %131 : vector<1x32x8xbf16> to vector<32x8xbf16>
    %cst_69 = arith.constant dense<0.000000e+00> : vector<8x8xf32>
    %133 = tpu.matmul %64, %132, %cst_69 {dimension_numbers = #tpu.dot_dimension_numbers<[1], [0], [0], [1], [0, 0, 1, 1], [], []>} : vector<8x32xbf16>, vector<32x8xbf16>, vector<8x8xf32> -> vector<8x8xf32>
    %c1_70 = arith.constant 1 : index
    %c0_71 = arith.constant 0 : index
    %c0_72 = arith.constant 0 : index
    %134 = vector.load %arg10[%c1_70, %c0_71, %c0_72] : memref<4x1x8xf32, #tpu.memory_space<vmem>>, vector<1x1x8xf32>
    %135 = vector.shape_cast %134 : vector<1x1x8xf32> to vector<1x8xf32>
    %136 = vector.broadcast %135 : vector<1x8xf32> to vector<8x8xf32>
    %137 = arith.addf %133, %136 : vector<8x8xf32>
    %138 = arith.truncf %123 : vector<8x8xf32> to vector<8x8xbf16>
    %139 = arith.truncf %130 : vector<8x8xf32> to vector<8x8xbf16>
    %cst_73 = arith.constant dense<0.000000e+00> : vector<8x8xf32>
    %140 = tpu.matmul %138, %139, %cst_73 {dimension_numbers = #tpu.dot_dimension_numbers<[1], [1], [0], [0], [0, 0, 1, 0], [], []>} : vector<8x8xbf16>, vector<8x8xbf16>, vector<8x8xf32> -> vector<8x8xf32>
    %cst_74 = arith.constant 0.353553385 : f32
    %141 = vector.broadcast %cst_74 : f32 to vector<8x8xf32>
    %142 = arith.mulf %140, %141 : vector<8x8xf32>
    %cst_75 = arith.constant -1.000000e+30 : f32
    %143 = vector.broadcast %cst_75 : f32 to vector<8x8xf32>
    %144 = arith.select %69, %142, %143 : vector<8x8xi1>, vector<8x8xf32>
    %cst_76 = arith.constant dense<0xFF800000> : vector<8xf32>
    %145 = vector.multi_reduction <maximumf>, %144, %cst_76 [1] : vector<8x8xf32> to vector<8xf32>
    %146 = vector.shape_cast %145 : vector<8xf32> to vector<8x1xf32>
    %147 = vector.broadcast %146 : vector<8x1xf32> to vector<8x8xf32>
    %148 = arith.subf %144, %147 : vector<8x8xf32>
    %149 = math.exp %148 : vector<8x8xf32>
    %cst_77 = arith.constant dense<0.000000e+00> : vector<8xf32>
    %150 = vector.multi_reduction <add>, %149, %cst_77 [1] : vector<8x8xf32> to vector<8xf32>
    %151 = vector.shape_cast %150 : vector<8xf32> to vector<8x1xf32>
    %152 = arith.truncf %149 : vector<8x8xf32> to vector<8x8xbf16>
    %153 = arith.truncf %137 : vector<8x8xf32> to vector<8x8xbf16>
    %cst_78 = arith.constant dense<0.000000e+00> : vector<8x8xf32>
    %154 = tpu.matmul %152, %153, %cst_78 {dimension_numbers = #tpu.dot_dimension_numbers<[1], [0], [0], [1], [0, 0, 1, 1], [], []>} : vector<8x8xbf16>, vector<8x8xbf16>, vector<8x8xf32> -> vector<8x8xf32>
    %155 = tpu.reciprocal %151 {approx = true} : vector<8x1xf32> -> vector<8x1xf32>
    %156 = vector.broadcast %155 : vector<8x1xf32> to vector<8x8xf32>
    %157 = arith.mulf %154, %156 : vector<8x8xf32>
    %158 = arith.truncf %157 : vector<8x8xf32> to vector<8x8xbf16>
    %c1_79 = arith.constant 1 : index
    %c0_80 = arith.constant 0 : index
    %c0_81 = arith.constant 0 : index
    %159 = vector.load %arg11[%c1_79, %c0_80, %c0_81] : memref<4x8x32xbf16, #tpu.memory_space<vmem>>, vector<1x8x32xbf16>
    %160 = vector.shape_cast %159 : vector<1x8x32xbf16> to vector<8x32xbf16>
    %cst_82 = arith.constant dense<0.000000e+00> : vector<8x32xf32>
    %161 = tpu.matmul %158, %160, %cst_82 {dimension_numbers = #tpu.dot_dimension_numbers<[1], [0], [0], [1], [0, 0, 1, 1], [], []>} : vector<8x8xbf16>, vector<8x32xbf16>, vector<8x32xf32> -> vector<8x32xf32>
    %162 = arith.addf %116, %161 : vector<8x32xf32>
    %c2 = arith.constant 2 : index
    %c0_83 = arith.constant 0 : index
    %c0_84 = arith.constant 0 : index
    %163 = vector.load %arg5[%c2, %c0_83, %c0_84] : memref<4x32x8xbf16, #tpu.memory_space<vmem>>, vector<1x32x8xbf16>
    %164 = vector.shape_cast %163 : vector<1x32x8xbf16> to vector<32x8xbf16>
    %cst_85 = arith.constant dense<0.000000e+00> : vector<8x8xf32>
    %165 = tpu.matmul %35, %164, %cst_85 {dimension_numbers = #tpu.dot_dimension_numbers<[1], [0], [0], [1], [0, 0, 1, 1], [], []>} : vector<8x32xbf16>, vector<32x8xbf16>, vector<8x8xf32> -> vector<8x8xf32>
    %c2_86 = arith.constant 2 : index
    %c0_87 = arith.constant 0 : index
    %c0_88 = arith.constant 0 : index
    %166 = vector.load %arg6[%c2_86, %c0_87, %c0_88] : memref<4x1x8xf32, #tpu.memory_space<vmem>>, vector<1x1x8xf32>
    %167 = vector.shape_cast %166 : vector<1x1x8xf32> to vector<1x8xf32>
    %168 = vector.broadcast %167 : vector<1x8xf32> to vector<8x8xf32>
    %169 = arith.addf %165, %168 : vector<8x8xf32>
    %c2_89 = arith.constant 2 : index
    %c0_90 = arith.constant 0 : index
    %c0_91 = arith.constant 0 : index
    %170 = vector.load %arg7[%c2_89, %c0_90, %c0_91] : memref<4x32x8xbf16, #tpu.memory_space<vmem>>, vector<1x32x8xbf16>
    %171 = vector.shape_cast %170 : vector<1x32x8xbf16> to vector<32x8xbf16>
    %cst_92 = arith.constant dense<0.000000e+00> : vector<8x8xf32>
    %172 = tpu.matmul %64, %171, %cst_92 {dimension_numbers = #tpu.dot_dimension_numbers<[1], [0], [0], [1], [0, 0, 1, 1], [], []>} : vector<8x32xbf16>, vector<32x8xbf16>, vector<8x8xf32> -> vector<8x8xf32>
    %c2_93 = arith.constant 2 : index
    %c0_94 = arith.constant 0 : index
    %c0_95 = arith.constant 0 : index
    %173 = vector.load %arg8[%c2_93, %c0_94, %c0_95] : memref<4x1x8xf32, #tpu.memory_space<vmem>>, vector<1x1x8xf32>
    %174 = vector.shape_cast %173 : vector<1x1x8xf32> to vector<1x8xf32>
    %175 = vector.broadcast %174 : vector<1x8xf32> to vector<8x8xf32>
    %176 = arith.addf %172, %175 : vector<8x8xf32>
    %c2_96 = arith.constant 2 : index
    %c0_97 = arith.constant 0 : index
    %c0_98 = arith.constant 0 : index
    %177 = vector.load %arg9[%c2_96, %c0_97, %c0_98] : memref<4x32x8xbf16, #tpu.memory_space<vmem>>, vector<1x32x8xbf16>
    %178 = vector.shape_cast %177 : vector<1x32x8xbf16> to vector<32x8xbf16>
    %cst_99 = arith.constant dense<0.000000e+00> : vector<8x8xf32>
    %179 = tpu.matmul %64, %178, %cst_99 {dimension_numbers = #tpu.dot_dimension_numbers<[1], [0], [0], [1], [0, 0, 1, 1], [], []>} : vector<8x32xbf16>, vector<32x8xbf16>, vector<8x8xf32> -> vector<8x8xf32>
    %c2_100 = arith.constant 2 : index
    %c0_101 = arith.constant 0 : index
    %c0_102 = arith.constant 0 : index
    %180 = vector.load %arg10[%c2_100, %c0_101, %c0_102] : memref<4x1x8xf32, #tpu.memory_space<vmem>>, vector<1x1x8xf32>
    %181 = vector.shape_cast %180 : vector<1x1x8xf32> to vector<1x8xf32>
    %182 = vector.broadcast %181 : vector<1x8xf32> to vector<8x8xf32>
    %183 = arith.addf %179, %182 : vector<8x8xf32>
    %184 = arith.truncf %169 : vector<8x8xf32> to vector<8x8xbf16>
    %185 = arith.truncf %176 : vector<8x8xf32> to vector<8x8xbf16>
    %cst_103 = arith.constant dense<0.000000e+00> : vector<8x8xf32>
    %186 = tpu.matmul %184, %185, %cst_103 {dimension_numbers = #tpu.dot_dimension_numbers<[1], [1], [0], [0], [0, 0, 1, 0], [], []>} : vector<8x8xbf16>, vector<8x8xbf16>, vector<8x8xf32> -> vector<8x8xf32>
    %cst_104 = arith.constant 0.353553385 : f32
    %187 = vector.broadcast %cst_104 : f32 to vector<8x8xf32>
    %188 = arith.mulf %186, %187 : vector<8x8xf32>
    %cst_105 = arith.constant -1.000000e+30 : f32
    %189 = vector.broadcast %cst_105 : f32 to vector<8x8xf32>
    %190 = arith.select %69, %188, %189 : vector<8x8xi1>, vector<8x8xf32>
    %cst_106 = arith.constant dense<0xFF800000> : vector<8xf32>
    %191 = vector.multi_reduction <maximumf>, %190, %cst_106 [1] : vector<8x8xf32> to vector<8xf32>
    %192 = vector.shape_cast %191 : vector<8xf32> to vector<8x1xf32>
    %193 = vector.broadcast %192 : vector<8x1xf32> to vector<8x8xf32>
    %194 = arith.subf %190, %193 : vector<8x8xf32>
    %195 = math.exp %194 : vector<8x8xf32>
    %cst_107 = arith.constant dense<0.000000e+00> : vector<8xf32>
    %196 = vector.multi_reduction <add>, %195, %cst_107 [1] : vector<8x8xf32> to vector<8xf32>
    %197 = vector.shape_cast %196 : vector<8xf32> to vector<8x1xf32>
    %198 = arith.truncf %195 : vector<8x8xf32> to vector<8x8xbf16>
    %199 = arith.truncf %183 : vector<8x8xf32> to vector<8x8xbf16>
    %cst_108 = arith.constant dense<0.000000e+00> : vector<8x8xf32>
    %200 = tpu.matmul %198, %199, %cst_108 {dimension_numbers = #tpu.dot_dimension_numbers<[1], [0], [0], [1], [0, 0, 1, 1], [], []>} : vector<8x8xbf16>, vector<8x8xbf16>, vector<8x8xf32> -> vector<8x8xf32>
    %201 = tpu.reciprocal %197 {approx = true} : vector<8x1xf32> -> vector<8x1xf32>
    %202 = vector.broadcast %201 : vector<8x1xf32> to vector<8x8xf32>
    %203 = arith.mulf %200, %202 : vector<8x8xf32>
    %204 = arith.truncf %203 : vector<8x8xf32> to vector<8x8xbf16>
    %c2_109 = arith.constant 2 : index
    %c0_110 = arith.constant 0 : index
    %c0_111 = arith.constant 0 : index
    %205 = vector.load %arg11[%c2_109, %c0_110, %c0_111] : memref<4x8x32xbf16, #tpu.memory_space<vmem>>, vector<1x8x32xbf16>
    %206 = vector.shape_cast %205 : vector<1x8x32xbf16> to vector<8x32xbf16>
    %cst_112 = arith.constant dense<0.000000e+00> : vector<8x32xf32>
    %207 = tpu.matmul %204, %206, %cst_112 {dimension_numbers = #tpu.dot_dimension_numbers<[1], [0], [0], [1], [0, 0, 1, 1], [], []>} : vector<8x8xbf16>, vector<8x32xbf16>, vector<8x32xf32> -> vector<8x32xf32>
    %208 = arith.addf %162, %207 : vector<8x32xf32>
    %c3 = arith.constant 3 : index
    %c0_113 = arith.constant 0 : index
    %c0_114 = arith.constant 0 : index
    %209 = vector.load %arg5[%c3, %c0_113, %c0_114] : memref<4x32x8xbf16, #tpu.memory_space<vmem>>, vector<1x32x8xbf16>
    %210 = vector.shape_cast %209 : vector<1x32x8xbf16> to vector<32x8xbf16>
    %cst_115 = arith.constant dense<0.000000e+00> : vector<8x8xf32>
    %211 = tpu.matmul %35, %210, %cst_115 {dimension_numbers = #tpu.dot_dimension_numbers<[1], [0], [0], [1], [0, 0, 1, 1], [], []>} : vector<8x32xbf16>, vector<32x8xbf16>, vector<8x8xf32> -> vector<8x8xf32>
    %c3_116 = arith.constant 3 : index
    %c0_117 = arith.constant 0 : index
    %c0_118 = arith.constant 0 : index
    %212 = vector.load %arg6[%c3_116, %c0_117, %c0_118] : memref<4x1x8xf32, #tpu.memory_space<vmem>>, vector<1x1x8xf32>
    %213 = vector.shape_cast %212 : vector<1x1x8xf32> to vector<1x8xf32>
    %214 = vector.broadcast %213 : vector<1x8xf32> to vector<8x8xf32>
    %215 = arith.addf %211, %214 : vector<8x8xf32>
    %c3_119 = arith.constant 3 : index
    %c0_120 = arith.constant 0 : index
    %c0_121 = arith.constant 0 : index
    %216 = vector.load %arg7[%c3_119, %c0_120, %c0_121] : memref<4x32x8xbf16, #tpu.memory_space<vmem>>, vector<1x32x8xbf16>
    %217 = vector.shape_cast %216 : vector<1x32x8xbf16> to vector<32x8xbf16>
    %cst_122 = arith.constant dense<0.000000e+00> : vector<8x8xf32>
    %218 = tpu.matmul %64, %217, %cst_122 {dimension_numbers = #tpu.dot_dimension_numbers<[1], [0], [0], [1], [0, 0, 1, 1], [], []>} : vector<8x32xbf16>, vector<32x8xbf16>, vector<8x8xf32> -> vector<8x8xf32>
    %c3_123 = arith.constant 3 : index
    %c0_124 = arith.constant 0 : index
    %c0_125 = arith.constant 0 : index
    %219 = vector.load %arg8[%c3_123, %c0_124, %c0_125] : memref<4x1x8xf32, #tpu.memory_space<vmem>>, vector<1x1x8xf32>
    %220 = vector.shape_cast %219 : vector<1x1x8xf32> to vector<1x8xf32>
    %221 = vector.broadcast %220 : vector<1x8xf32> to vector<8x8xf32>
    %222 = arith.addf %218, %221 : vector<8x8xf32>
    %c3_126 = arith.constant 3 : index
    %c0_127 = arith.constant 0 : index
    %c0_128 = arith.constant 0 : index
    %223 = vector.load %arg9[%c3_126, %c0_127, %c0_128] : memref<4x32x8xbf16, #tpu.memory_space<vmem>>, vector<1x32x8xbf16>
    %224 = vector.shape_cast %223 : vector<1x32x8xbf16> to vector<32x8xbf16>
    %cst_129 = arith.constant dense<0.000000e+00> : vector<8x8xf32>
    %225 = tpu.matmul %64, %224, %cst_129 {dimension_numbers = #tpu.dot_dimension_numbers<[1], [0], [0], [1], [0, 0, 1, 1], [], []>} : vector<8x32xbf16>, vector<32x8xbf16>, vector<8x8xf32> -> vector<8x8xf32>
    %c3_130 = arith.constant 3 : index
    %c0_131 = arith.constant 0 : index
    %c0_132 = arith.constant 0 : index
    %226 = vector.load %arg10[%c3_130, %c0_131, %c0_132] : memref<4x1x8xf32, #tpu.memory_space<vmem>>, vector<1x1x8xf32>
    %227 = vector.shape_cast %226 : vector<1x1x8xf32> to vector<1x8xf32>
    %228 = vector.broadcast %227 : vector<1x8xf32> to vector<8x8xf32>
    %229 = arith.addf %225, %228 : vector<8x8xf32>
    %230 = arith.truncf %215 : vector<8x8xf32> to vector<8x8xbf16>
    %231 = arith.truncf %222 : vector<8x8xf32> to vector<8x8xbf16>
    %cst_133 = arith.constant dense<0.000000e+00> : vector<8x8xf32>
    %232 = tpu.matmul %230, %231, %cst_133 {dimension_numbers = #tpu.dot_dimension_numbers<[1], [1], [0], [0], [0, 0, 1, 0], [], []>} : vector<8x8xbf16>, vector<8x8xbf16>, vector<8x8xf32> -> vector<8x8xf32>
    %cst_134 = arith.constant 0.353553385 : f32
    %233 = vector.broadcast %cst_134 : f32 to vector<8x8xf32>
    %234 = arith.mulf %232, %233 : vector<8x8xf32>
    %cst_135 = arith.constant -1.000000e+30 : f32
    %235 = vector.broadcast %cst_135 : f32 to vector<8x8xf32>
    %236 = arith.select %69, %234, %235 : vector<8x8xi1>, vector<8x8xf32>
    %cst_136 = arith.constant dense<0xFF800000> : vector<8xf32>
    %237 = vector.multi_reduction <maximumf>, %236, %cst_136 [1] : vector<8x8xf32> to vector<8xf32>
    %238 = vector.shape_cast %237 : vector<8xf32> to vector<8x1xf32>
    %239 = vector.broadcast %238 : vector<8x1xf32> to vector<8x8xf32>
    %240 = arith.subf %236, %239 : vector<8x8xf32>
    %241 = math.exp %240 : vector<8x8xf32>
    %cst_137 = arith.constant dense<0.000000e+00> : vector<8xf32>
    %242 = vector.multi_reduction <add>, %241, %cst_137 [1] : vector<8x8xf32> to vector<8xf32>
    %243 = vector.shape_cast %242 : vector<8xf32> to vector<8x1xf32>
    %244 = arith.truncf %241 : vector<8x8xf32> to vector<8x8xbf16>
    %245 = arith.truncf %229 : vector<8x8xf32> to vector<8x8xbf16>
    %cst_138 = arith.constant dense<0.000000e+00> : vector<8x8xf32>
    %246 = tpu.matmul %244, %245, %cst_138 {dimension_numbers = #tpu.dot_dimension_numbers<[1], [0], [0], [1], [0, 0, 1, 1], [], []>} : vector<8x8xbf16>, vector<8x8xbf16>, vector<8x8xf32> -> vector<8x8xf32>
    %247 = tpu.reciprocal %243 {approx = true} : vector<8x1xf32> -> vector<8x1xf32>
    %248 = vector.broadcast %247 : vector<8x1xf32> to vector<8x8xf32>
    %249 = arith.mulf %246, %248 : vector<8x8xf32>
    %250 = arith.truncf %249 : vector<8x8xf32> to vector<8x8xbf16>
    %c3_139 = arith.constant 3 : index
    %c0_140 = arith.constant 0 : index
    %c0_141 = arith.constant 0 : index
    %251 = vector.load %arg11[%c3_139, %c0_140, %c0_141] : memref<4x8x32xbf16, #tpu.memory_space<vmem>>, vector<1x8x32xbf16>
    %252 = vector.shape_cast %251 : vector<1x8x32xbf16> to vector<8x32xbf16>
    %cst_142 = arith.constant dense<0.000000e+00> : vector<8x32xf32>
    %253 = tpu.matmul %250, %252, %cst_142 {dimension_numbers = #tpu.dot_dimension_numbers<[1], [0], [0], [1], [0, 0, 1, 1], [], []>} : vector<8x8xbf16>, vector<8x32xbf16>, vector<8x32xf32> -> vector<8x32xf32>
    %254 = arith.addf %208, %253 : vector<8x32xf32>
    %255 = arith.addf %4, %254 : vector<8x32xf32>
    %c0_143 = arith.constant 0 : index
    %c0_144 = arith.constant 0 : index
    %256 = vector.load %arg12[%c0_143, %c0_144] : memref<1x32xf32, #tpu.memory_space<vmem>>, vector<1x32xf32>
    %257 = vector.shape_cast %256 : vector<1x32xf32> to vector<32xf32>
    %258 = vector.shape_cast %257 : vector<32xf32> to vector<1x32xf32>
    %259 = vector.broadcast %258 : vector<1x32xf32> to vector<8x32xf32>
    %260 = arith.addf %255, %259 : vector<8x32xf32>
    %c0_145 = arith.constant 0 : index
    %c0_146 = arith.constant 0 : index
    %261 = vector.load %arg13[%c0_145, %c0_146] : memref<1x32xf32, #tpu.memory_space<vmem>>, vector<1x32xf32>
    %262 = vector.shape_cast %261 : vector<1x32xf32> to vector<32xf32>
    %c0_147 = arith.constant 0 : index
    %c0_148 = arith.constant 0 : index
    %263 = vector.load %arg14[%c0_147, %c0_148] : memref<1x32xf32, #tpu.memory_space<vmem>>, vector<1x32xf32>
    %264 = vector.shape_cast %263 : vector<1x32xf32> to vector<32xf32>
    %cst_149 = arith.constant dense<0.000000e+00> : vector<8xf32>
    %265 = vector.multi_reduction <add>, %260, %cst_149 [1] : vector<8x32xf32> to vector<8xf32>
    %266 = vector.shape_cast %265 : vector<8xf32> to vector<8x1xf32>
    %cst_150 = arith.constant 3.200000e+01 : f32
    %267 = vector.broadcast %cst_150 : f32 to vector<8x1xf32>
    %268 = arith.divf %266, %267 : vector<8x1xf32>
    %269 = vector.broadcast %268 : vector<8x1xf32> to vector<8x32xf32>
    %270 = arith.subf %260, %269 : vector<8x32xf32>
    %271 = arith.mulf %270, %270 : vector<8x32xf32>
    %cst_151 = arith.constant dense<0.000000e+00> : vector<8xf32>
    %272 = vector.multi_reduction <add>, %271, %cst_151 [1] : vector<8x32xf32> to vector<8xf32>
    %273 = vector.shape_cast %272 : vector<8xf32> to vector<8x1xf32>
    %cst_152 = arith.constant 3.200000e+01 : f32
    %274 = vector.broadcast %cst_152 : f32 to vector<8x1xf32>
    %275 = arith.divf %273, %274 : vector<8x1xf32>
    %276 = vector.broadcast %268 : vector<8x1xf32> to vector<8x32xf32>
    %277 = arith.subf %260, %276 : vector<8x32xf32>
    %cst_153 = arith.constant 9.99999974E-6 : f32
    %278 = vector.broadcast %cst_153 : f32 to vector<8x1xf32>
    %279 = arith.addf %275, %278 : vector<8x1xf32>
    %280 = math.rsqrt %279 : vector<8x1xf32>
    %281 = vector.broadcast %280 : vector<8x1xf32> to vector<8x32xf32>
    %282 = arith.mulf %277, %281 : vector<8x32xf32>
    %283 = vector.shape_cast %262 : vector<32xf32> to vector<1x32xf32>
    %284 = vector.broadcast %283 : vector<1x32xf32> to vector<8x32xf32>
    %285 = arith.mulf %282, %284 : vector<8x32xf32>
    %286 = vector.shape_cast %264 : vector<32xf32> to vector<1x32xf32>
    %287 = vector.broadcast %286 : vector<1x32xf32> to vector<8x32xf32>
    %288 = arith.addf %285, %287 : vector<8x32xf32>
    %289 = arith.truncf %288 : vector<8x32xf32> to vector<8x32xbf16>
    %c0_154 = arith.constant 0 : index
    %c0_155 = arith.constant 0 : index
    %290 = vector.load %arg15[%c0_154, %c0_155] : memref<32x128xbf16, #tpu.memory_space<vmem>>, vector<32x128xbf16>
    %cst_156 = arith.constant dense<0.000000e+00> : vector<8x128xf32>
    %291 = tpu.matmul %289, %290, %cst_156 {dimension_numbers = #tpu.dot_dimension_numbers<[1], [0], [0], [1], [0, 0, 1, 1], [], []>} : vector<8x32xbf16>, vector<32x128xbf16>, vector<8x128xf32> -> vector<8x128xf32>
    %c0_157 = arith.constant 0 : index
    %c0_158 = arith.constant 0 : index
    %292 = vector.load %arg16[%c0_157, %c0_158] : memref<1x128xf32, #tpu.memory_space<vmem>>, vector<1x128xf32>
    %293 = vector.shape_cast %292 : vector<1x128xf32> to vector<128xf32>
    %294 = vector.shape_cast %293 : vector<128xf32> to vector<1x128xf32>
    %295 = vector.broadcast %294 : vector<1x128xf32> to vector<8x128xf32>
    %296 = arith.addf %291, %295 : vector<8x128xf32>
    %cst_159 = arith.constant 5.000000e-01 : f32
    %297 = vector.broadcast %cst_159 : f32 to vector<8x128xf32>
    %298 = arith.mulf %297, %296 : vector<8x128xf32>
    %cst_160 = arith.constant 4.471500e-02 : f32
    %299 = vector.broadcast %cst_160 : f32 to vector<8x128xf32>
    %300 = arith.mulf %299, %296 : vector<8x128xf32>
    %301 = arith.mulf %300, %296 : vector<8x128xf32>
    %302 = arith.mulf %301, %296 : vector<8x128xf32>
    %303 = arith.addf %296, %302 : vector<8x128xf32>
    %cst_161 = arith.constant 0.797884583 : f32
    %304 = vector.broadcast %cst_161 : f32 to vector<8x128xf32>
    %305 = arith.mulf %304, %303 : vector<8x128xf32>
    %306 = math.tanh %305 : vector<8x128xf32>
    %cst_162 = arith.constant 1.000000e+00 : f32
    %307 = vector.broadcast %cst_162 : f32 to vector<8x128xf32>
    %308 = arith.addf %307, %306 : vector<8x128xf32>
    %309 = arith.mulf %298, %308 : vector<8x128xf32>
    %310 = arith.truncf %309 : vector<8x128xf32> to vector<8x128xbf16>
    %c0_163 = arith.constant 0 : index
    %c0_164 = arith.constant 0 : index
    %311 = vector.load %arg17[%c0_163, %c0_164] : memref<128x32xbf16, #tpu.memory_space<vmem>>, vector<128x32xbf16>
    %cst_165 = arith.constant dense<0.000000e+00> : vector<8x32xf32>
    %312 = tpu.matmul %310, %311, %cst_165 {dimension_numbers = #tpu.dot_dimension_numbers<[1], [0], [0], [1], [0, 0, 1, 1], [], []>} : vector<8x128xbf16>, vector<128x32xbf16>, vector<8x32xf32> -> vector<8x32xf32>
    %c0_166 = arith.constant 0 : index
    %c0_167 = arith.constant 0 : index
    %313 = vector.load %arg18[%c0_166, %c0_167] : memref<1x32xf32, #tpu.memory_space<vmem>>, vector<1x32xf32>
    %314 = vector.shape_cast %313 : vector<1x32xf32> to vector<32xf32>
    %315 = vector.shape_cast %314 : vector<32xf32> to vector<1x32xf32>
    %316 = vector.broadcast %315 : vector<1x32xf32> to vector<8x32xf32>
    %317 = arith.addf %312, %316 : vector<8x32xf32>
    %318 = arith.addf %260, %317 : vector<8x32xf32>
    %c0_168 = arith.constant 0 : index
    %c0_169 = arith.constant 0 : index
    %c0_170 = arith.constant 0 : index
    %319 = vector.load %arg19[%c0_168, %c0_169, %c0_170] : memref<1x8x32xf32, #tpu.memory_space<vmem>>, vector<1x8x32xf32>
    %320 = vector.shape_cast %319 : vector<1x8x32xf32> to vector<8x32xf32>
    %321 = vector.shape_cast %318 : vector<8x32xf32> to vector<1x8x32xf32>
    tpu.vector_store %arg19[%c0_168, %c0_169, %c0_170], %321 {strides = array<i32>} : memref<1x8x32xf32, #tpu.memory_space<vmem>>, vector<1x8x32xf32>,
    return
  }
  func.func @transform_0(%arg0: i32, %arg1: i32) -> (i32, i32, i32) {
    %c0_i32 = arith.constant 0 : i32
    %c0_i32_0 = arith.constant 0 : i32
    %c0_i32_1 = arith.constant 0 : i32
    return %arg0, %c0_i32, %c0_i32_0 : i32, i32, i32
  }
  func.func @transform_1(%arg0: i32, %arg1: i32) -> (i32, i32) {
    %c0_i32 = arith.constant 0 : i32
    %c0_i32_0 = arith.constant 0 : i32
    %c0_i32_1 = arith.constant 0 : i32
    return %c0_i32, %c0_i32_0 : i32, i32
  }
  func.func @transform_2(%arg0: i32, %arg1: i32) -> (i32, i32) {
    %c0_i32 = arith.constant 0 : i32
    %c0_i32_0 = arith.constant 0 : i32
    %c0_i32_1 = arith.constant 0 : i32
    return %c0_i32, %c0_i32_0 : i32, i32
  }
  func.func @transform_3(%arg0: i32, %arg1: i32) -> (i32, i32, i32) {
    %c0_i32 = arith.constant 0 : i32
    %c0_i32_0 = arith.constant 0 : i32
    %c0_i32_1 = arith.constant 0 : i32
    %c0_i32_2 = arith.constant 0 : i32
    return %c0_i32, %c0_i32_0, %c0_i32_1 : i32, i32, i32
  }
  func.func @transform_4(%arg0: i32, %arg1: i32) -> (i32, i32, i32) {
    %c0_i32 = arith.constant 0 : i32
    %c0_i32_0 = arith.constant 0 : i32
    %c0_i32_1 = arith.constant 0 : i32
    %c0_i32_2 = arith.constant 0 : i32
    return %c0_i32, %c0_i32_0, %c0_i32_1 : i32, i32, i32
  }
  func.func @transform_5(%arg0: i32, %arg1: i32) -> (i32, i32, i32) {
    %c0_i32 = arith.constant 0 : i32
    %c0_i32_0 = arith.constant 0 : i32
    %c0_i32_1 = arith.constant 0 : i32
    %c0_i32_2 = arith.constant 0 : i32
    return %c0_i32, %c0_i32_0, %c0_i32_1 : i32, i32, i32
  }
  func.func @transform_6(%arg0: i32, %arg1: i32) -> (i32, i32, i32) {
    %c0_i32 = arith.constant 0 : i32
    %c0_i32_0 = arith.constant 0 : i32
    %c0_i32_1 = arith.constant 0 : i32
    %c0_i32_2 = arith.constant 0 : i32
    return %c0_i32, %c0_i32_0, %c0_i32_1 : i32, i32, i32
  }
  func.func @transform_7(%arg0: i32, %arg1: i32) -> (i32, i32, i32) {
    %c0_i32 = arith.constant 0 : i32
    %c0_i32_0 = arith.constant 0 : i32
    %c0_i32_1 = arith.constant 0 : i32
    %c0_i32_2 = arith.constant 0 : i32
    return %c0_i32, %c0_i32_0, %c0_i32_1 : i32, i32, i32
  }
  func.func @transform_8(%arg0: i32, %arg1: i32) -> (i32, i32, i32) {
    %c0_i32 = arith.constant 0 : i32
    %c0_i32_0 = arith.constant 0 : i32
    %c0_i32_1 = arith.constant 0 : i32
    %c0_i32_2 = arith.constant 0 : i32
    return %c0_i32, %c0_i32_0, %c0_i32_1 : i32, i32, i32
  }
  func.func @transform_9(%arg0: i32, %arg1: i32) -> (i32, i32, i32) {
    %c0_i32 = arith.constant 0 : i32
    %c0_i32_0 = arith.constant 0 : i32
    %c0_i32_1 = arith.constant 0 : i32
    %c0_i32_2 = arith.constant 0 : i32
    return %c0_i32, %c0_i32_0, %c0_i32_1 : i32, i32, i32
  }
  func.func @transform_10(%arg0: i32, %arg1: i32) -> (i32, i32) {
    %c0_i32 = arith.constant 0 : i32
    %c0_i32_0 = arith.constant 0 : i32
    %c0_i32_1 = arith.constant 0 : i32
    return %c0_i32, %c0_i32_0 : i32, i32
  }
  func.func @transform_11(%arg0: i32, %arg1: i32) -> (i32, i32) {
    %c0_i32 = arith.constant 0 : i32
    %c0_i32_0 = arith.constant 0 : i32
    %c0_i32_1 = arith.constant 0 : i32
    return %c0_i32, %c0_i32_0 : i32, i32
  }
  func.func @transform_12(%arg0: i32, %arg1: i32) -> (i32, i32) {
    %c0_i32 = arith.constant 0 : i32
    %c0_i32_0 = arith.constant 0 : i32
    %c0_i32_1 = arith.constant 0 : i32
    return %c0_i32, %c0_i32_0 : i32, i32
  }
  func.func @transform_13(%arg0: i32, %arg1: i32) -> (i32, i32) {
    %c0_i32 = arith.constant 0 : i32
    %c0_i32_0 = arith.constant 0 : i32
    %c0_i32_1 = arith.constant 0 : i32
    return %c0_i32, %c0_i32_0 : i32, i32
  }
  func.func @transform_14(%arg0: i32, %arg1: i32) -> (i32, i32) {
    %c0_i32 = arith.constant 0 : i32
    %c0_i32_0 = arith.constant 0 : i32
    %c0_i32_1 = arith.constant 0 : i32
    return %c0_i32, %c0_i32_0 : i32, i32
  }
  func.func @transform_15(%arg0: i32, %arg1: i32) -> (i32, i32) {
    %c0_i32 = arith.constant 0 : i32
    %c0_i32_0 = arith.constant 0 : i32
    %c0_i32_1 = arith.constant 0 : i32
    return %c0_i32, %c0_i32_0 : i32, i32
  }
  func.func @transform_16(%arg0: i32, %arg1: i32) -> (i32, i32) {
    %c0_i32 = arith.constant 0 : i32
    %c0_i32_0 = arith.constant 0 : i32
    %c0_i32_1 = arith.constant 0 : i32
    return %c0_i32, %c0_i32_0 : i32, i32
  }
  func.func @transform_17(%arg0: i32, %arg1: i32) -> (i32, i32, i32) {
    %c0_i32 = arith.constant 0 : i32
    %c0_i32_0 = arith.constant 0 : i32
    return %arg0, %arg1, %c0_i32 : i32, i32, i32
  }
}

</mosaic_0001>

<llo_original>
// kernel: tpu_custom_call.1
$region0: #{tpu_custom_call.1}
  #allocation0 [shape = 'u32[]', space=smem, size = 0x4, offset = 0x4, fixed_abs, tag = 'smem constant byte address 0x4 - core index']
  #allocation1 [shape = 'u32[72,128]{1,0:T(1,128)}', space=vmem, size = 0x9000, scoped, tag = 'internal scratch']
  %s0 = inlined_call_operand.vmem [shape: f32[2,8,32], index: 0, kind: input, shape index: {}]
  %s1 = inlined_call_operand.vmem [shape: f32[1,32], index: 1, kind: input, shape index: {}]
  %s2 = inlined_call_operand.vmem [shape: f32[1,32], index: 2, kind: input, shape index: {}]
  %s3 = inlined_call_operand.vmem [shape: bf16[4,32,8], index: 3, kind: input, shape index: {}]
  %s4 = inlined_call_operand.vmem [shape: f32[4,1,8], index: 4, kind: input, shape index: {}]
  %s5 = inlined_call_operand.vmem [shape: bf16[4,32,8], index: 5, kind: input, shape index: {}]
  %s6 = inlined_call_operand.vmem [shape: f32[4,1,8], index: 6, kind: input, shape index: {}]
  %s7 = inlined_call_operand.vmem [shape: bf16[4,32,8], index: 7, kind: input, shape index: {}]
  %s8 = inlined_call_operand.vmem [shape: f32[4,1,8], index: 8, kind: input, shape index: {}]
  %s9 = inlined_call_operand.vmem [shape: bf16[4,8,32], index: 9, kind: input, shape index: {}]
  %s10 = inlined_call_operand.vmem [shape: f32[1,32], index: 10, kind: input, shape index: {}]
  %s11 = inlined_call_operand.vmem [shape: f32[1,32], index: 11, kind: input, shape index: {}]
  %s12 = inlined_call_operand.vmem [shape: f32[1,32], index: 12, kind: input, shape index: {}]
  %s13 = inlined_call_operand.vmem [shape: bf16[32,128], index: 13, kind: input, shape index: {}]
  %s14 = inlined_call_operand.vmem [shape: f32[1,128], index: 14, kind: input, shape index: {}]
  %s15 = inlined_call_operand.vmem [shape: bf16[128,32], index: 15, kind: input, shape index: {}]
  %s16 = inlined_call_operand.vmem [shape: f32[1,32], index: 16, kind: input, shape index: {}]
  %s17 = inlined_call_operand.hbm [shape: f32[2,8,32], index: 17, kind: output, shape index: {}]
  %s18 = sld [smem:[#allocation0]]
  $region101: #{tpu_custom_call.1} parent=0
    _
  %s20 = ssub.s32 1, %s18
  %s21 = scalar_select 0, %s20, %s18
  $region1: #{tpu_custom_call.1} parent=0
    #allocation2 [shape = 'u8[8192]{0}', space=vmem, size = 0x2000, scoped, tag = 'output window, operand 0']
    #allocation3 [shape = 's32[2]{0}', space=sflag, size = 0x8, scoped, tag = 'scoped memory for tpu_custom_call.1']
    %22 = vsyncpa [#allocation3], 0
    %s23 = scalar_lea.sflag [#allocation3], 1
    %24 = vsyncpa %s23, 0
    loop: start=0, step=1, limit=4
    $region2: #{tpu_custom_call.1} parent=1 // loop_pre_header
      _
    $region3: #{tpu_custom_call.1} parent=1 // loop_header
      %s26 = sphi 0, %s30
      %p27 = scmp.ge.s32.totalorder %s26, 4
      %s33 = sphi 0, %s45
      %s34 = sphi 0, %s41
      %s35 = sphi 0, %s33
      %s36 = sphi 0, %s34
      %s37 = sphi 0, %s35
      %s38 = sphi 0, %s36
      %s48 = sphi 0, %s50
      %s51 = sphi 0, %s48
      %s52 = sphi 0, %s51
      %s68 = sphi 0, %s52
      %s72 = sphi 0, %s72
      %s74 = sphi 0, %s72
      %s75 = sphi 0, %s74
      %s89 = sphi 0, %s75
      %s93 = sphi 0, %s93
      %s95 = sphi 0, %s93
      %s96 = sphi 0, %s95
      %s110 = sphi 0, %s96
      %s114 = sphi 0, %s114
      %s116 = sphi 0, %s114
      %s117 = sphi 0, %s116
      %s131 = sphi 0, %s117
      %s135 = sphi 0, %s135
      %s137 = sphi 0, %s135
      %s138 = sphi 0, %s137
      %s152 = sphi 0, %s138
      %s156 = sphi 0, %s156
      %s158 = sphi 0, %s156
      %s159 = sphi 0, %s158
      %s173 = sphi 0, %s159
      %s177 = sphi 0, %s177
      %s179 = sphi 0, %s177
      %s180 = sphi 0, %s179
      %s194 = sphi 0, %s180
      %s198 = sphi 0, %s198
      %s200 = sphi 0, %s198
      %s201 = sphi 0, %s200
      %s215 = sphi 0, %s201
      %s219 = sphi 0, %s219
      %s221 = sphi 0, %s219
      %s222 = sphi 0, %s221
      %s236 = sphi 0, %s222
      %s240 = sphi 0, %s240
      %s242 = sphi 0, %s240
      %s243 = sphi 0, %s242
      %s257 = sphi 0, %s243
      %s261 = sphi 0, %s261
      %s263 = sphi 0, %s261
      %s264 = sphi 0, %s263
      %s278 = sphi 0, %s264
      %s282 = sphi 0, %s282
      %s284 = sphi 0, %s282
      %s285 = sphi 0, %s284
      %s299 = sphi 0, %s285
      %s303 = sphi 0, %s303
      %s305 = sphi 0, %s303
      %s306 = sphi 0, %s305
      %s320 = sphi 0, %s306
      %s324 = sphi 0, %s324
      %s326 = sphi 0, %s324
      %s327 = sphi 0, %s326
      %s341 = sphi 0, %s327
      %s345 = sphi 0, %s345
      %s347 = sphi 0, %s345
      %s348 = sphi 0, %s347
      %s362 = sphi 0, %s348
      %s366 = sphi 0, %s366
      %s368 = sphi 0, %s366
      %s369 = sphi 0, %s368
      %s383 = sphi 0, %s369
      %s387 = sphi 0, %s387
      %s389 = sphi 0, %s387
      %s390 = sphi 0, %s389
      %s404 = sphi 0, %s390
      %s412 = sphi 0, %s414
      %s415 = sphi 0, %s412
      %s416 = sphi 0, %s415
      %s432 = sphi 0, %s416
    $region4: #{tpu_custom_call.1} parent=1 // loop_header_branch
      %29 = sbr.rel (%p27) target = $region8
    $region5: #{tpu_custom_call.1} parent=1 // loop_body
      %s31 = ssub.s32 %s26, 1
      %s32 = ssub.s32 %s26, 2
      %s39 = sadd.s32 1, %s34
      %p40 = scmp.ge.s32.totalorder %s39, 1
      %s41 = scalar_select %p40, 0, %s39
      %s42 = sadd.s32 1, %s33
      %s43 = scalar_select %p40, %s42, %s33
      %p44 = scmp.ge.s32.totalorder %s43, 2
      %s45 = scalar_select %p44, 0, %s43
      %s46 = ssub.s32 %s33, %s45
      %p47 = scmp.eq.s32.totalorder %s46, 0
      %s49 = sadd.s32 %s48, 1
      %s50 = scalar_select %p47, %s48, %s49
      %p53 = pneg %p47
      %p54 = scmp.eq.s32.totalorder %s26, 1
      %p55 = por %p53, %p54
      %p56 = scmp.ne.s32.totalorder %s48, %s51
      %p57 = scmp.eq.s32.totalorder %s26, 0
      %p58 = por %p56, %p57
      %p59 = scmp.ne.s32.totalorder %s48, %s51
      %p60 = scmp.eq.s32.totalorder %s31, 1
      %p61 = por %p59, %p60
      %p62 = scmp.ne.s32.totalorder %s51, %s52
      %p63 = scmp.eq.s32.totalorder %s31, 0
      %p64 = por %p62, %p63
      %p65 = scmp.ne.s32.totalorder %s51, %s52
      %p66 = scmp.eq.s32.totalorder %s32, 1
      %p67 = por %p65, %p66
      %p69 = scmp.ne.s32.totalorder %s52, %s68
      %p70 = scmp.eq.s32.totalorder %s32, 0
      %p71 = por %p69, %p70
      %s73 = sadd.s32 %s72, 1
      %p76 = scmp.eq.s32.totalorder %s26, 1
      %p77 = scmp.ne.s32.totalorder %s72, %s74
      %p78 = scmp.eq.s32.totalorder %s26, 0
      %p79 = por %p77, %p78
      %p80 = scmp.ne.s32.totalorder %s72, %s74
      %p81 = scmp.eq.s32.totalorder %s31, 1
      %p82 = por %p80, %p81
      %p83 = scmp.ne.s32.totalorder %s74, %s75
      %p84 = scmp.eq.s32.totalorder %s31, 0
      %p85 = por %p83, %p84
      %p86 = scmp.ne.s32.totalorder %s74, %s75
      %p87 = scmp.eq.s32.totalorder %s32, 1
      %p88 = por %p86, %p87
      %p90 = scmp.ne.s32.totalorder %s75, %s89
      %p91 = scmp.eq.s32.totalorder %s32, 0
      %p92 = por %p90, %p91
      %s94 = sadd.s32 %s93, 1
      %p97 = scmp.eq.s32.totalorder %s26, 1
      %p98 = scmp.ne.s32.totalorder %s93, %s95
      %p99 = scmp.eq.s32.totalorder %s26, 0
      %p100 = por %p98, %p99
      %p101 = scmp.ne.s32.totalorder %s93, %s95
      %p102 = scmp.eq.s32.totalorder %s31, 1
      %p103 = por %p101, %p102
      %p104 = scmp.ne.s32.totalorder %s95, %s96
      %p105 = scmp.eq.s32.totalorder %s31, 0
      %p106 = por %p104, %p105
      %p107 = scmp.ne.s32.totalorder %s95, %s96
      %p108 = scmp.eq.s32.totalorder %s32, 1
      %p109 = por %p107, %p108
      %p111 = scmp.ne.s32.totalorder %s96, %s110
      %p112 = scmp.eq.s32.totalorder %s32, 0
      %p113 = por %p111, %p112
      %s115 = sadd.s32 %s114, 1
      %p118 = scmp.eq.s32.totalorder %s26, 1
      %p119 = scmp.ne.s32.totalorder %s114, %s116
      %p120 = scmp.eq.s32.totalorder %s26, 0
      %p121 = por %p119, %p120
      %p122 = scmp.ne.s32.totalorder %s114, %s116
      %p123 = scmp.eq.s32.totalorder %s31, 1
      %p124 = por %p122, %p123
      %p125 = scmp.ne.s32.totalorder %s116, %s117
      %p126 = scmp.eq.s32.totalorder %s31, 0
      %p127 = por %p125, %p126
      %p128 = scmp.ne.s32.totalorder %s116, %s117
      %p129 = scmp.eq.s32.totalorder %s32, 1
      %p130 = por %p128, %p129
      %p132 = scmp.ne.s32.totalorder %s117, %s131
      %p133 = scmp.eq.s32.totalorder %s32, 0
      %p134 = por %p132, %p133
      %s136 = sadd.s32 %s135, 1
      %p139 = scmp.eq.s32.totalorder %s26, 1
      %p140 = scmp.ne.s32.totalorder %s135, %s137
      %p141 = scmp.eq.s32.totalorder %s26, 0
      %p142 = por %p140, %p141
      %p143 = scmp.ne.s32.totalorder %s135, %s137
      %p144 = scmp.eq.s32.totalorder %s31, 1
      %p145 = por %p143, %p144
      %p146 = scmp.ne.s32.totalorder %s137, %s138
      %p147 = scmp.eq.s32.totalorder %s31, 0
      %p148 = por %p146, %p147
      %p149 = scmp.ne.s32.totalorder %s137, %s138
      %p150 = scmp.eq.s32.totalorder %s32, 1
      %p151 = por %p149, %p150
      %p153 = scmp.ne.s32.totalorder %s138, %s152
      %p154 = scmp.eq.s32.totalorder %s32, 0
      %p155 = por %p153, %p154
      %s157 = sadd.s32 %s156, 1
      %p160 = scmp.eq.s32.totalorder %s26, 1
      %p161 = scmp.ne.s32.totalorder %s156, %s158
      %p162 = scmp.eq.s32.totalorder %s26, 0
      %p163 = por %p161, %p162
      %p164 = scmp.ne.s32.totalorder %s156, %s158
      %p165 = scmp.eq.s32.totalorder %s31, 1
      %p166 = por %p164, %p165
      %p167 = scmp.ne.s32.totalorder %s158, %s159
      %p168 = scmp.eq.s32.totalorder %s31, 0
      %p169 = por %p167, %p168
      %p170 = scmp.ne.s32.totalorder %s158, %s159
      %p171 = scmp.eq.s32.totalorder %s32, 1
      %p172 = por %p170, %p171
      %p174 = scmp.ne.s32.totalorder %s159, %s173
      %p175 = scmp.eq.s32.totalorder %s32, 0
      %p176 = por %p174, %p175
      %s178 = sadd.s32 %s177, 1
      %p181 = scmp.eq.s32.totalorder %s26, 1
      %p182 = scmp.ne.s32.totalorder %s177, %s179
      %p183 = scmp.eq.s32.totalorder %s26, 0
      %p184 = por %p182, %p183
      %p185 = scmp.ne.s32.totalorder %s177, %s179
      %p186 = scmp.eq.s32.totalorder %s31, 1
      %p187 = por %p185, %p186
      %p188 = scmp.ne.s32.totalorder %s179, %s180
      %p189 = scmp.eq.s32.totalorder %s31, 0
      %p190 = por %p188, %p189
      %p191 = scmp.ne.s32.totalorder %s179, %s180
      %p192 = scmp.eq.s32.totalorder %s32, 1
      %p193 = por %p191, %p192
      %p195 = scmp.ne.s32.totalorder %s180, %s194
      %p196 = scmp.eq.s32.totalorder %s32, 0
      %p197 = por %p195, %p196
      %s199 = sadd.s32 %s198, 1
      %p202 = scmp.eq.s32.totalorder %s26, 1
      %p203 = scmp.ne.s32.totalorder %s198, %s200
      %p204 = scmp.eq.s32.totalorder %s26, 0
      %p205 = por %p203, %p204
      %p206 = scmp.ne.s32.totalorder %s198, %s200
      %p207 = scmp.eq.s32.totalorder %s31, 1
      %p208 = por %p206, %p207
      %p209 = scmp.ne.s32.totalorder %s200, %s201
      %p210 = scmp.eq.s32.totalorder %s31, 0
      %p211 = por %p209, %p210
      %p212 = scmp.ne.s32.totalorder %s200, %s201
      %p213 = scmp.eq.s32.totalorder %s32, 1
      %p214 = por %p212, %p213
      %p216 = scmp.ne.s32.totalorder %s201, %s215
      %p217 = scmp.eq.s32.totalorder %s32, 0
      %p218 = por %p216, %p217
      %s220 = sadd.s32 %s219, 1
      %p223 = scmp.eq.s32.totalorder %s26, 1
      %p224 = scmp.ne.s32.totalorder %s219, %s221
      %p225 = scmp.eq.s32.totalorder %s26, 0
      %p226 = por %p224, %p225
      %p227 = scmp.ne.s32.totalorder %s219, %s221
      %p228 = scmp.eq.s32.totalorder %s31, 1
      %p229 = por %p227, %p228
      %p230 = scmp.ne.s32.totalorder %s221, %s222
      %p231 = scmp.eq.s32.totalorder %s31, 0
      %p232 = por %p230, %p231
      %p233 = scmp.ne.s32.totalorder %s221, %s222
      %p234 = scmp.eq.s32.totalorder %s32, 1
      %p235 = por %p233, %p234
      %p237 = scmp.ne.s32.totalorder %s222, %s236
      %p238 = scmp.eq.s32.totalorder %s32, 0
      %p239 = por %p237, %p238
      %s241 = sadd.s32 %s240, 1
      %p244 = scmp.eq.s32.totalorder %s26, 1
      %p245 = scmp.ne.s32.totalorder %s240, %s242
      %p246 = scmp.eq.s32.totalorder %s26, 0
      %p247 = por %p245, %p246
      %p248 = scmp.ne.s32.totalorder %s240, %s242
      %p249 = scmp.eq.s32.totalorder %s31, 1
      %p250 = por %p248, %p249
      %p251 = scmp.ne.s32.totalorder %s242, %s243
      %p252 = scmp.eq.s32.totalorder %s31, 0
      %p253 = por %p251, %p252
      %p254 = scmp.ne.s32.totalorder %s242, %s243
      %p255 = scmp.eq.s32.totalorder %s32, 1
      %p256 = por %p254, %p255
      %p258 = scmp.ne.s32.totalorder %s243, %s257
      %p259 = scmp.eq.s32.totalorder %s32, 0
      %p260 = por %p258, %p259
      %s262 = sadd.s32 %s261, 1
      %p265 = scmp.eq.s32.totalorder %s26, 1
      %p266 = scmp.ne.s32.totalorder %s261, %s263
      %p267 = scmp.eq.s32.totalorder %s26, 0
      %p268 = por %p266, %p267
      %p269 = scmp.ne.s32.totalorder %s261, %s263
      %p270 = scmp.eq.s32.totalorder %s31, 1
      %p271 = por %p269, %p270
      %p272 = scmp.ne.s32.totalorder %s263, %s264
      %p273 = scmp.eq.s32.totalorder %s31, 0
      %p274 = por %p272, %p273
      %p275 = scmp.ne.s32.totalorder %s263, %s264
      %p276 = scmp.eq.s32.totalorder %s32, 1
      %p277 = por %p275, %p276
      %p279 = scmp.ne.s32.totalorder %s264, %s278
      %p280 = scmp.eq.s32.totalorder %s32, 0
      %p281 = por %p279, %p280
      %s283 = sadd.s32 %s282, 1
      %p286 = scmp.eq.s32.totalorder %s26, 1
      %p287 = scmp.ne.s32.totalorder %s282, %s284
      %p288 = scmp.eq.s32.totalorder %s26, 0
      %p289 = por %p287, %p288
      %p290 = scmp.ne.s32.totalorder %s282, %s284
      %p291 = scmp.eq.s32.totalorder %s31, 1
      %p292 = por %p290, %p291
      %p293 = scmp.ne.s32.totalorder %s284, %s285
      %p294 = scmp.eq.s32.totalorder %s31, 0
      %p295 = por %p293, %p294
      %p296 = scmp.ne.s32.totalorder %s284, %s285
      %p297 = scmp.eq.s32.totalorder %s32, 1
      %p298 = por %p296, %p297
      %p300 = scmp.ne.s32.totalorder %s285, %s299
      %p301 = scmp.eq.s32.totalorder %s32, 0
      %p302 = por %p300, %p301
      %s304 = sadd.s32 %s303, 1
      %p307 = scmp.eq.s32.totalorder %s26, 1
      %p308 = scmp.ne.s32.totalorder %s303, %s305
      %p309 = scmp.eq.s32.totalorder %s26, 0
      %p310 = por %p308, %p309
      %p311 = scmp.ne.s32.totalorder %s303, %s305
      %p312 = scmp.eq.s32.totalorder %s31, 1
      %p313 = por %p311, %p312
      %p314 = scmp.ne.s32.totalorder %s305, %s306
      %p315 = scmp.eq.s32.totalorder %s31, 0
      %p316 = por %p314, %p315
      %p317 = scmp.ne.s32.totalorder %s305, %s306
      %p318 = scmp.eq.s32.totalorder %s32, 1
      %p319 = por %p317, %p318
      %p321 = scmp.ne.s32.totalorder %s306, %s320
      %p322 = scmp.eq.s32.totalorder %s32, 0
      %p323 = por %p321, %p322
      %s325 = sadd.s32 %s324, 1
      %p328 = scmp.eq.s32.totalorder %s26, 1
      %p329 = scmp.ne.s32.totalorder %s324, %s326
      %p330 = scmp.eq.s32.totalorder %s26, 0
      %p331 = por %p329, %p330
      %p332 = scmp.ne.s32.totalorder %s324, %s326
      %p333 = scmp.eq.s32.totalorder %s31, 1
      %p334 = por %p332, %p333
      %p335 = scmp.ne.s32.totalorder %s326, %s327
      %p336 = scmp.eq.s32.totalorder %s31, 0
      %p337 = por %p335, %p336
      %p338 = scmp.ne.s32.totalorder %s326, %s327
      %p339 = scmp.eq.s32.totalorder %s32, 1
      %p340 = por %p338, %p339
      %p342 = scmp.ne.s32.totalorder %s327, %s341
      %p343 = scmp.eq.s32.totalorder %s32, 0
      %p344 = por %p342, %p343
      %s346 = sadd.s32 %s345, 1
      %p349 = scmp.eq.s32.totalorder %s26, 1
      %p350 = scmp.ne.s32.totalorder %s345, %s347
      %p351 = scmp.eq.s32.totalorder %s26, 0
      %p352 = por %p350, %p351
      %p353 = scmp.ne.s32.totalorder %s345, %s347
      %p354 = scmp.eq.s32.totalorder %s31, 1
      %p355 = por %p353, %p354
      %p356 = scmp.ne.s32.totalorder %s347, %s348
      %p357 = scmp.eq.s32.totalorder %s31, 0
      %p358 = por %p356, %p357
      %p359 = scmp.ne.s32.totalorder %s347, %s348
      %p360 = scmp.eq.s32.totalorder %s32, 1
      %p361 = por %p359, %p360
      %p363 = scmp.ne.s32.totalorder %s348, %s362
      %p364 = scmp.eq.s32.totalorder %s32, 0
      %p365 = por %p363, %p364
      %s367 = sadd.s32 %s366, 1
      %p370 = scmp.eq.s32.totalorder %s26, 1
      %p371 = scmp.ne.s32.totalorder %s366, %s368
      %p372 = scmp.eq.s32.totalorder %s26, 0
      %p373 = por %p371, %p372
      %p374 = scmp.ne.s32.totalorder %s366, %s368
      %p375 = scmp.eq.s32.totalorder %s31, 1
      %p376 = por %p374, %p375
      %p377 = scmp.ne.s32.totalorder %s368, %s369
      %p378 = scmp.eq.s32.totalorder %s31, 0
      %p379 = por %p377, %p378
      %p380 = scmp.ne.s32.totalorder %s368, %s369
      %p381 = scmp.eq.s32.totalorder %s32, 1
      %p382 = por %p380, %p381
      %p384 = scmp.ne.s32.totalorder %s369, %s383
      %p385 = scmp.eq.s32.totalorder %s32, 0
      %p386 = por %p384, %p385
      %s388 = sadd.s32 %s387, 1
      %p391 = scmp.eq.s32.totalorder %s26, 1
      %p392 = scmp.ne.s32.totalorder %s387, %s389
      %p393 = scmp.eq.s32.totalorder %s26, 0
      %p394 = por %p392, %p393
      %p395 = scmp.ne.s32.totalorder %s387, %s389
      %p396 = scmp.eq.s32.totalorder %s31, 1
      %p397 = por %p395, %p396
      %p398 = scmp.ne.s32.totalorder %s389, %s390
      %p399 = scmp.eq.s32.totalorder %s31, 0
      %p400 = por %p398, %p399
      %p401 = scmp.ne.s32.totalorder %s389, %s390
      %p402 = scmp.eq.s32.totalorder %s32, 1
      %p403 = por %p401, %p402
      %p405 = scmp.ne.s32.totalorder %s390, %s404
      %p406 = scmp.eq.s32.totalorder %s32, 0
      %p407 = por %p405, %p406
      %s408 = ssub.s32 %s33, %s45
      %s409 = ssub.s32 %s34, %s41
      %s410 = sor.u32 %s408, %s409
      %p411 = scmp.eq.s32.totalorder %s410, 0
      %s413 = sadd.s32 %s412, 1
      %s414 = scalar_select %p411, %s412, %s413
      %p417 = pneg %p411
      %p418 = scmp.eq.s32.totalorder %s26, 1
      %p419 = por %p417, %p418
      %p420 = scmp.ne.s32.totalorder %s412, %s415
      %p421 = scmp.eq.s32.totalorder %s26, 0
      %p422 = por %p420, %p421
      %p423 = scmp.ne.s32.totalorder %s412, %s415
      %p424 = scmp.eq.s32.totalorder %s31, 1
      %p425 = por %p423, %p424
      %p426 = scmp.ne.s32.totalorder %s415, %s416
      %p427 = scmp.eq.s32.totalorder %s31, 0
      %p428 = por %p426, %p427
      %p429 = scmp.ne.s32.totalorder %s415, %s416
      %p430 = scmp.eq.s32.totalorder %s32, 1
      %p431 = por %p429, %p430
      %p433 = scmp.ne.s32.totalorder %s416, %s432
      %p434 = scmp.eq.s32.totalorder %s32, 0
      %p435 = por %p433, %p434
      %p436 = scmp.le.s32.totalorder 1, %s26
      %p437 = scmp.lt.s32.totalorder %s26, 3
      %p438 = pnand %p436, %p437
      %p439 = pneg %p438
      // Predicated region
      $region9: #{tpu_custom_call.1} parent=5 // pred_check
        _
      $region10: #{tpu_custom_call.1} parent=5 // pred_check_branch
        %441 = sbr.rel (%p438) target = $region12
      $region11: #{tpu_custom_call.1} parent=5 // pred_region
        %s442 = ssub.s32 %s26, 1
        // Predicated region
        $region13: #{tpu_custom_call.1} parent=11 // pred_check
          %p443 = pneg %p85
        $region14: #{tpu_custom_call.1} parent=11 // pred_check_branch
          %445 = sbr.rel (%p443) target = $region16
        $region15: #{tpu_custom_call.1} parent=11 // pred_region
          _
        $region16: #{tpu_custom_call.1} parent=11 // pred_fallthru
          _
        // Predicated region
        $region17: #{tpu_custom_call.1} parent=11 // pred_check
          %p446 = pneg %p106
        $region18: #{tpu_custom_call.1} parent=11 // pred_check_branch
          %448 = sbr.rel (%p446) target = $region20
        $region19: #{tpu_custom_call.1} parent=11 // pred_region
          _
        $region20: #{tpu_custom_call.1} parent=11 // pred_fallthru
          _
        // Predicated region
        $region21: #{tpu_custom_call.1} parent=11 // pred_check
          %p449 = pneg %p127
        $region22: #{tpu_custom_call.1} parent=11 // pred_check_branch
          %451 = sbr.rel (%p449) target = $region24
        $region23: #{tpu_custom_call.1} parent=11 // pred_region
          _
        $region24: #{tpu_custom_call.1} parent=11 // pred_fallthru
          _
        // Predicated region
        $region25: #{tpu_custom_call.1} parent=11 // pred_check
          %p452 = pneg %p148
        $region26: #{tpu_custom_call.1} parent=11 // pred_check_branch
          %454 = sbr.rel (%p452) target = $region28
        $region27: #{tpu_custom_call.1} parent=11 // pred_region
          _
        $region28: #{tpu_custom_call.1} parent=11 // pred_fallthru
          _
        // Predicated region
        $region29: #{tpu_custom_call.1} parent=11 // pred_check
          %p455 = pneg %p169
        $region30: #{tpu_custom_call.1} parent=11 // pred_check_branch
          %457 = sbr.rel (%p455) target = $region32
        $region31: #{tpu_custom_call.1} parent=11 // pred_region
          _
        $region32: #{tpu_custom_call.1} parent=11 // pred_fallthru
          _
        // Predicated region
        $region33: #{tpu_custom_call.1} parent=11 // pred_check
          %p458 = pneg %p190
        $region34: #{tpu_custom_call.1} parent=11 // pred_check_branch
          %460 = sbr.rel (%p458) target = $region36
        $region35: #{tpu_custom_call.1} parent=11 // pred_region
          _
        $region36: #{tpu_custom_call.1} parent=11 // pred_fallthru
          _
        // Predicated region
        $region37: #{tpu_custom_call.1} parent=11 // pred_check
          %p461 = pneg %p211
        $region38: #{tpu_custom_call.1} parent=11 // pred_check_branch
          %463 = sbr.rel (%p461) target = $region40
        $region39: #{tpu_custom_call.1} parent=11 // pred_region
          _
        $region40: #{tpu_custom_call.1} parent=11 // pred_fallthru
          _
        // Predicated region
        $region41: #{tpu_custom_call.1} parent=11 // pred_check
          %p464 = pneg %p232
        $region42: #{tpu_custom_call.1} parent=11 // pred_check_branch
          %466 = sbr.rel (%p464) target = $region44
        $region43: #{tpu_custom_call.1} parent=11 // pred_region
          _
        $region44: #{tpu_custom_call.1} parent=11 // pred_fallthru
          _
        // Predicated region
        $region45: #{tpu_custom_call.1} parent=11 // pred_check
          %p467 = pneg %p253
        $region46: #{tpu_custom_call.1} parent=11 // pred_check_branch
          %469 = sbr.rel (%p467) target = $region48
        $region47: #{tpu_custom_call.1} parent=11 // pred_region
          _
        $region48: #{tpu_custom_call.1} parent=11 // pred_fallthru
          _
        // Predicated region
        $region49: #{tpu_custom_call.1} parent=11 // pred_check
          %p470 = pneg %p274
        $region50: #{tpu_custom_call.1} parent=11 // pred_check_branch
          %472 = sbr.rel (%p470) target = $region52
        $region51: #{tpu_custom_call.1} parent=11 // pred_region
          _
        $region52: #{tpu_custom_call.1} parent=11 // pred_fallthru
          _
        // Predicated region
        $region53: #{tpu_custom_call.1} parent=11 // pred_check
          %p473 = pneg %p295
        $region54: #{tpu_custom_call.1} parent=11 // pred_check_branch
          %475 = sbr.rel (%p473) target = $region56
        $region55: #{tpu_custom_call.1} parent=11 // pred_region
          _
        $region56: #{tpu_custom_call.1} parent=11 // pred_fallthru
          _
        // Predicated region
        $region57: #{tpu_custom_call.1} parent=11 // pred_check
          %p476 = pneg %p316
        $region58: #{tpu_custom_call.1} parent=11 // pred_check_branch
          %478 = sbr.rel (%p476) target = $region60
        $region59: #{tpu_custom_call.1} parent=11 // pred_region
          _
        $region60: #{tpu_custom_call.1} parent=11 // pred_fallthru
          _
        // Predicated region
        $region61: #{tpu_custom_call.1} parent=11 // pred_check
          %p479 = pneg %p337
        $region62: #{tpu_custom_call.1} parent=11 // pred_check_branch
          %481 = sbr.rel (%p479) target = $region64
        $region63: #{tpu_custom_call.1} parent=11 // pred_region
          _
        $region64: #{tpu_custom_call.1} parent=11 // pred_fallthru
          _
        // Predicated region
        $region65: #{tpu_custom_call.1} parent=11 // pred_check
          %p482 = pneg %p358
        $region66: #{tpu_custom_call.1} parent=11 // pred_check_branch
          %484 = sbr.rel (%p482) target = $region68
        $region67: #{tpu_custom_call.1} parent=11 // pred_region
          _
        $region68: #{tpu_custom_call.1} parent=11 // pred_fallthru
          _
        // Predicated region
        $region69: #{tpu_custom_call.1} parent=11 // pred_check
          %p485 = pneg %p379
        $region70: #{tpu_custom_call.1} parent=11 // pred_check_branch
          %487 = sbr.rel (%p485) target = $region72
        $region71: #{tpu_custom_call.1} parent=11 // pred_region
          _
        $region72: #{tpu_custom_call.1} parent=11 // pred_fallthru
          _
        // Predicated region
        $region73: #{tpu_custom_call.1} parent=11 // pred_check
          %p488 = pneg %p400
        $region74: #{tpu_custom_call.1} parent=11 // pred_check_branch
          %490 = sbr.rel (%p488) target = $region76
        $region75: #{tpu_custom_call.1} parent=11 // pred_region
          _
        $region76: #{tpu_custom_call.1} parent=11 // pred_fallthru
          _
      $region12: #{tpu_custom_call.1} parent=5 // pred_fallthru
        _
      %p491 = scmp.lt.s32.totalorder %s26, 2
      // Predicated region
      $region77: #{tpu_custom_call.1} parent=5 // pred_check
        %p492 = pneg %p491
      $region78: #{tpu_custom_call.1} parent=5 // pred_check_branch
        %494 = sbr.rel (%p492) target = $region80
      $region79: #{tpu_custom_call.1} parent=5 // pred_region
        // Predicated region
        $region81: #{tpu_custom_call.1} parent=79 // pred_check
          %p495 = pneg %p58
        $region82: #{tpu_custom_call.1} parent=79 // pred_check_branch
          %497 = sbr.rel (%p495) target = $region84
        $region83: #{tpu_custom_call.1} parent=79 // pred_region
          %p498 = scmp.lt.s32.totalorder %s33, 1
          %s499 = scalar_select %p498, %s33, 1
          %s500 = smul.addr %s499, 8
          %s501 = scalar_lea.vmem %s0, %s500
        $region84: #{tpu_custom_call.1} parent=79 // pred_fallthru
          _
      $region80: #{tpu_custom_call.1} parent=5 // pred_fallthru
        _
      %p502 = scmp.le.s32.totalorder 1, %s26
      %p503 = scmp.lt.s32.totalorder %s26, 3
      %p504 = pnand %p502, %p503
      %p505 = pneg %p504
      // Predicated region
      $region85: #{tpu_custom_call.1} parent=5 // pred_check
        _
      $region86: #{tpu_custom_call.1} parent=5 // pred_check_branch
        %507 = sbr.rel (%p504) target = $region88
      $region87: #{tpu_custom_call.1} parent=5 // pred_region
        %s508 = ssub.s32 %s26, 1
        %p509 = scmp.lt.s32.totalorder %s35, 1
        %s510 = scalar_select %p509, %s35, 1
        %s511 = smul.addr %s510, 8
        %s512 = scalar_lea.vmem %s0, %s511
        %p513 = pneg %p64
        %p514 = pneg %p61
        %p515 = pneg %p85
        %p516 = pneg %p82
        %p517 = pneg %p106
        %p518 = pneg %p103
        %p519 = pneg %p127
        %p520 = pneg %p124
        %p521 = pneg %p148
        %p522 = pneg %p145
        %p523 = pneg %p169
        %p524 = pneg %p166
        %p525 = pneg %p190
        %p526 = pneg %p187
        %p527 = pneg %p211
        %p528 = pneg %p208
        %p529 = pneg %p232
        %p530 = pneg %p229
        %p531 = pneg %p253
        %p532 = pneg %p250
        %p533 = pneg %p274
        %p534 = pneg %p271
        %p535 = pneg %p295
        %p536 = pneg %p292
        %p537 = pneg %p316
        %p538 = pneg %p313
        %p539 = pneg %p337
        %p540 = pneg %p334
        %p541 = pneg %p358
        %p542 = pneg %p355
        %p543 = pneg %p379
        %p544 = pneg %p376
        %p545 = pneg %p400
        %p546 = pneg %p397
        %p547 = pneg %p428
        %p548 = pneg %p425
        %s549 = sand.u32 %s415, 1
        %s550 = scalar_lea.sflag [#allocation3], %s549
        %s551 = sand.u32 %s415, 1
        %s552 = smul.addr %s551, 8
        %s553 = scalar_lea.vmem [#allocation2], %s552
        %p554 = scmp.lt.s32.totalorder %s35, 1
        %s555 = scalar_select %p554, %s35, 1
        %s556 = smul.addr %s555, 8
        %s557 = scalar_lea.vmem %s0, %s556
        %s559 = smul.u32 %s36, 8
        %s560 = scalar_lea.vmem %s557, %s559
        %v561 = vld [vmem:[%s560] sm:$0xff]
        %v562 = vld [vmem:[%s557] sm:$0xff]
        %v563 = vld [vmem:[%s1] sm:$0x1]
        %v564 = vld [vmem:[%s2] sm:$0x1]
        %vm565 = vcmask 261120
        %v566 = vsel %vm565, %v561, 0.0
        %567 = vadd.xlane.f32.xlu0 %v566
        %v568 = vpop.xlane.xlu0 %567
        %v569 = vrcp.pop 32.0
        %v570 = vmul.f32 32.0, %v569
        %v571 = vsub.f32 1.0, %v570
        %v572 = vmul.f32 %v569, %v571
        %v573 = vadd.f32 %v569, %v572
        %vm574 = vweird.f32 %v569
        %v575 = vsel %vm574, %v569, %v573
        %v576 = vmul.f32 %v568, %v575
        %v577 = vsub.f32 %v561, %v576
        %v578 = vmul.f32 %v577, %v577
        %v579 = vsel %vm565, %v578, 0.0
        %580 = vadd.xlane.f32.xlu0 %v579
        %v581 = vpop.xlane.xlu0 %580
        %v582 = vmul.f32 %v581, %v575
        %v583 = vadd.f32 %v582, 1e-05
        %v584 = vrsqrt.pop %v583
        %v585 = vmul.f32 %v584, %v583
        %v586 = vmul.f32 %v585, %v584
        %v587 = vmul.f32 0.5, %v586
        %v588 = vsub.f32 1.5, %v587
        %v589 = vmul.f32 %v584, %v588
        %vm590 = vweird.f32 %v583
        %vm591 = vweird.f32 %v584
        %vm592 = vmor %vm590, %vm591
        %v593 = vsel %vm592, %v584, %v589
        %v594 = vmul.f32 %v577, %v593
        %v596 = vperm.slane %v563, 0
        %v598 = vmul.f32 %v594, %v596
        %v600 = vperm.slane %v564, 0
        %v602 = vadd.f32 %v598, %v600
        %v603 = vpack.c.bf16 %v602, %v602
        %v604 = vsel %vm565, %v562, 0.0
        %605 = vadd.xlane.f32.xlu0 %v604
        %v606 = vpop.xlane.xlu0 %605
        %v607 = vmul.f32 %v606, %v575
        %v608 = vsub.f32 %v562, %v607
        %v609 = vmul.f32 %v608, %v608
        %v610 = vsel %vm565, %v609, 0.0
        %611 = vadd.xlane.f32.xlu0 %v610
        %v612 = vpop.xlane.xlu0 %611
        %v613 = vmul.f32 %v612, %v575
        %v614 = vadd.f32 %v613, 1e-05
        %v615 = vrsqrt.pop %v614
        %v616 = vmul.f32 %v615, %v614
        %v617 = vmul.f32 %v616, %v615
        %v618 = vmul.f32 0.5, %v617
        %v619 = vsub.f32 1.5, %v618
        %v620 = vmul.f32 %v615, %v619
        %vm621 = vweird.f32 %v614
        %vm622 = vweird.f32 %v615
        %vm623 = vmor %vm621, %vm622
        %v624 = vsel %vm623, %v615, %v620
        %v625 = vmul.f32 %v608, %v624
        %v626 = vmul.f32 %v625, %v596
        %v627 = vadd.f32 %v626, %v600
        %v628 = vpack.c.bf16 %v627, %v627
        %v629 = vlaneseq
        %v630 = vshrl.u32 %v629, 7
        %v631 = vstv %s559
        %v632 = vadd.s32 %v631, %v630
        %v633 = vlaneseq
        %v634 = vand.u32 %v633, 127
        %vm635 = vcmp.le.s32.totalorder %v634, %v632
        %v636 = vld [vmem:[%s3] sm:$0xf]
        %v637 = vld [vmem:[%s3 + $0x4] sm:$0xf]
        %v638 = vld [vmem:[%s3 + $0x8] sm:$0xf]
        %v639 = vld [vmem:[%s3 + $0xc] sm:$0xf]
        %v640 = vld [vmem:[%s4] sm:$0x1]
        %v642 = vperm.slane %v640, 0
        %v648 = vunpack.c.l.b16 %v636
        %v649 = vunpack.c.l.b16 %v637
        %v650 = vunpack.c.l.b16 %v638
        %v651 = vunpack.c.l.b16 %v639
        %v652 = vpack.c.b16 %v649, %v648
        %v653 = vpack.c.b16 %v651, %v650
        %v657 = vsel %vm565, %v603, 0
        %659 = vmatpush.bf16.msra.mxu0 0
        %660 = vmatpush.bf16.msra.mxu0 0
        %661 = vmatpush.bf16.msra.mxu0 0
        %662 = vmatpush.bf16.msra.mxu0 0
        %663 = vmatpush.bf16.msra.mxu0 0
        %664 = vmatpush.bf16.msra.mxu0 0
        %665 = vmatpush.bf16.msra.mxu0 %v653
        %666 = vmatpush.bf16.msra.mxu0 %v652
        %667 = vmatmul.bf16.gmra.mxu0 %v657
        %v668 = vpop.f32.mrf.mxu0
        %v669 = vadd.f32 %v642, %v668
        %v670 = vpop.f32.mrf.mxu0
        %671 = vdwg.mxu0
        %v672 = vld [vmem:[%s5] sm:$0xf]
        %v673 = vld [vmem:[%s5 + $0x4] sm:$0xf]
        %v674 = vld [vmem:[%s5 + $0x8] sm:$0xf]
        %v675 = vld [vmem:[%s5 + $0xc] sm:$0xf]
        %v676 = vld [vmem:[%s6] sm:$0x1]
        %v678 = vperm.slane %v676, 0
        %v684 = vunpack.c.l.b16 %v672
        %v685 = vunpack.c.l.b16 %v673
        %v686 = vunpack.c.l.b16 %v674
        %v687 = vunpack.c.l.b16 %v675
        %v688 = vpack.c.b16 %v685, %v684
        %v689 = vpack.c.b16 %v687, %v686
        %v693 = vsel %vm565, %v628, 0
        %695 = vmatpush.bf16.msra.mxu0 0
        %696 = vmatpush.bf16.msra.mxu0 0
        %697 = vmatpush.bf16.msra.mxu0 0
        %698 = vmatpush.bf16.msra.mxu0 0
        %699 = vmatpush.bf16.msra.mxu0 0
        %700 = vmatpush.bf16.msra.mxu0 0
        %701 = vmatpush.bf16.msra.mxu0 %v689
        %702 = vmatpush.bf16.msra.mxu0 %v688
        %703 = vmatmul.bf16.gmra.mxu0 %v693
        %v704 = vpop.f32.mrf.mxu0
        %v705 = vadd.f32 %v678, %v704
        %v706 = vpop.f32.mrf.mxu0
        %707 = vdwg.mxu0
        %v708 = vld [vmem:[%s7] sm:$0xf]
        %v709 = vld [vmem:[%s7 + $0x4] sm:$0xf]
        %v710 = vld [vmem:[%s7 + $0x8] sm:$0xf]
        %v711 = vld [vmem:[%s7 + $0xc] sm:$0xf]
        %v712 = vld [vmem:[%s8] sm:$0x1]
        %v714 = vperm.slane %v712, 0
        %v720 = vunpack.c.l.b16 %v708
        %v721 = vunpack.c.l.b16 %v709
        %v722 = vunpack.c.l.b16 %v710
        %v723 = vunpack.c.l.b16 %v711
        %v724 = vpack.c.b16 %v721, %v720
        %v725 = vpack.c.b16 %v723, %v722
        %728 = vmatpush.bf16.msra.mxu0 0
        %729 = vmatpush.bf16.msra.mxu0 0
        %730 = vmatpush.bf16.msra.mxu0 0
        %731 = vmatpush.bf16.msra.mxu0 0
        %732 = vmatpush.bf16.msra.mxu0 0
        %733 = vmatpush.bf16.msra.mxu0 0
        %734 = vmatpush.bf16.msra.mxu0 %v725
        %735 = vmatpush.bf16.msra.mxu0 %v724
        %736 = vmatmul.bf16.gmra.mxu0 %v693
        %v737 = vpop.f32.mrf.mxu0
        %v738 = vadd.f32 %v714, %v737
        %v739 = vpop.f32.mrf.mxu0
        %740 = vdwg.mxu0
        %v741 = vpack.c.bf16 %v669, %v669
        %v742 = vpack.c.bf16 %v705, %v705
        %vm743 = vcmask 64512
        %v745 = vsel %vm743, %v741, 0
        %v748 = vsel %vm743, %v742, 0
        %750 = vmatpush.bf16.xpose.msra.mxu0 0
        %751 = vmatpush.bf16.xpose.msra.mxu0 0
        %752 = vmatpush.bf16.xpose.msra.mxu0 0
        %753 = vmatpush.bf16.xpose.msra.mxu0 0
        %754 = vmatpush.bf16.xpose.msra.mxu0 0
        %755 = vmatpush.bf16.xpose.msra.mxu0 0
        %756 = vmatpush.bf16.xpose.msra.mxu0 0
        %757 = vmatpush.bf16.xpose.msra.mxu0 %v748
        %758 = vmatmul.bf16.gmra.mxu0 %v745
        %v759 = vpop.f32.mrf.mxu0
        %v760 = vadd.f32 0.0, %v759
        %v761 = vpop.f32.mrf.mxu0
        %762 = vdwg.mxu0
        %v763 = vmul.f32 %v760, 0.35355338
        %v764 = vsel %vm635, %v763, -1e+30
        %v765 = vsel %vm743, %v764, -inf
        %766 = vmax.xlane.f32.xlu0 %v765
        %v767 = vpop.xlane.xlu0 %766
        %v768 = vsub.f32 %v764, %v767
        %v769 = vmul.f32 %v768, 1.442695
        %v770 = vpow.pop %v769
        %v771 = vsel %vm743, %v770, 0.0
        %772 = vadd.xlane.f32.xlu0 %v771
        %v773 = vpop.xlane.xlu0 %772
        %v774 = vpack.c.bf16 %v770, %v770
        %v775 = vpack.c.bf16 %v738, %v738
        %v777 = vsel %vm743, %v774, 0
        %vm779 = vcmask 1043456
        %v781 = vsel %vm779, %v775, 0
        %783 = vmatpush.bf16.msra.mxu0 0
        %784 = vmatpush.bf16.msra.mxu0 0
        %785 = vmatpush.bf16.msra.mxu0 0
        %786 = vmatpush.bf16.msra.mxu0 0
        %787 = vmatpush.bf16.msra.mxu0 0
        %788 = vmatpush.bf16.msra.mxu0 0
        %789 = vmatpush.bf16.msra.mxu0 0
        %790 = vmatpush.bf16.msra.mxu0 %v781
        %791 = vmatmul.bf16.gmra.mxu0 %v777
        %v792 = vpop.f32.mrf.mxu0
        %v793 = vadd.f32 0.0, %v792
        %v794 = vpop.f32.mrf.mxu0
        %795 = vdwg.mxu0
        %v796 = vrcp.pop %v773
        %v797 = vmul.f32 %v793, %v796
        %v798 = vpack.c.bf16 %v797, %v797
        %v799 = vld [vmem:[%s9] sm:$0xf]
        %s800 = scalar_lea.vmem %s3, 16
        %v801 = vld [vmem:[%s800] sm:$0xf]
        %v802 = vld [vmem:[%s800 + $0x4] sm:$0xf]
        %v803 = vld [vmem:[%s800 + $0x8] sm:$0xf]
        %v804 = vld [vmem:[%s800 + $0xc] sm:$0xf]
        %s805 = scalar_lea.vmem %s4, 1
        %v806 = vld [vmem:[%s805] sm:$0x1]
        %v808 = vperm.slane %v806, 0
        %v814 = vunpack.c.l.b16 %v801
        %v815 = vunpack.c.l.b16 %v802
        %v816 = vunpack.c.l.b16 %v803
        %v817 = vunpack.c.l.b16 %v804
        %v818 = vpack.c.b16 %v815, %v814
        %v819 = vpack.c.b16 %v817, %v816
        %822 = vmatpush.bf16.msra.mxu0 0
        %823 = vmatpush.bf16.msra.mxu0 0
        %824 = vmatpush.bf16.msra.mxu0 0
        %825 = vmatpush.bf16.msra.mxu0 0
        %826 = vmatpush.bf16.msra.mxu0 0
        %827 = vmatpush.bf16.msra.mxu0 0
        %828 = vmatpush.bf16.msra.mxu0 %v819
        %829 = vmatpush.bf16.msra.mxu0 %v818
        %830 = vmatmul.bf16.gmra.mxu0 %v657
        %v831 = vpop.f32.mrf.mxu0
        %v832 = vadd.f32 %v808, %v831
        %v833 = vpop.f32.mrf.mxu0
        %834 = vdwg.mxu0
        %s835 = scalar_lea.vmem %s5, 16
        %v836 = vld [vmem:[%s835] sm:$0xf]
        %v837 = vld [vmem:[%s835 + $0x4] sm:$0xf]
        %v838 = vld [vmem:[%s835 + $0x8] sm:$0xf]
        %v839 = vld [vmem:[%s835 + $0xc] sm:$0xf]
        %s840 = scalar_lea.vmem %s6, 1
        %v841 = vld [vmem:[%s840] sm:$0x1]
        %v843 = vperm.slane %v841, 0
        %v849 = vunpack.c.l.b16 %v836
        %v850 = vunpack.c.l.b16 %v837
        %v851 = vunpack.c.l.b16 %v838
        %v852 = vunpack.c.l.b16 %v839
        %v853 = vpack.c.b16 %v850, %v849
        %v854 = vpack.c.b16 %v852, %v851
        %857 = vmatpush.bf16.msra.mxu0 0
        %858 = vmatpush.bf16.msra.mxu0 0
        %859 = vmatpush.bf16.msra.mxu0 0
        %860 = vmatpush.bf16.msra.mxu0 0
        %861 = vmatpush.bf16.msra.mxu0 0
        %862 = vmatpush.bf16.msra.mxu0 0
        %863 = vmatpush.bf16.msra.mxu0 %v854
        %864 = vmatpush.bf16.msra.mxu0 %v853
        %865 = vmatmul.bf16.gmra.mxu0 %v693
        %v866 = vpop.f32.mrf.mxu0
        %v867 = vadd.f32 %v843, %v866
        %v868 = vpop.f32.mrf.mxu0
        %869 = vdwg.mxu0
        %s870 = scalar_lea.vmem %s7, 16
        %v871 = vld [vmem:[%s870] sm:$0xf]
        %v872 = vld [vmem:[%s870 + $0x4] sm:$0xf]
        %v873 = vld [vmem:[%s870 + $0x8] sm:$0xf]
        %v874 = vld [vmem:[%s870 + $0xc] sm:$0xf]
        %s875 = scalar_lea.vmem %s8, 1
        %v876 = vld [vmem:[%s875] sm:$0x1]
        %v878 = vperm.slane %v876, 0
        %v884 = vunpack.c.l.b16 %v871
        %v885 = vunpack.c.l.b16 %v872
        %v886 = vunpack.c.l.b16 %v873
        %v887 = vunpack.c.l.b16 %v874
        %v888 = vpack.c.b16 %v885, %v884
        %v889 = vpack.c.b16 %v887, %v886
        %892 = vmatpush.bf16.msra.mxu0 0
        %893 = vmatpush.bf16.msra.mxu0 0
        %894 = vmatpush.bf16.msra.mxu0 0
        %895 = vmatpush.bf16.msra.mxu0 0
        %896 = vmatpush.bf16.msra.mxu0 0
        %897 = vmatpush.bf16.msra.mxu0 0
        %898 = vmatpush.bf16.msra.mxu0 %v889
        %899 = vmatpush.bf16.msra.mxu0 %v888
        %900 = vmatmul.bf16.gmra.mxu0 %v693
        %v901 = vpop.f32.mrf.mxu0
        %v902 = vadd.f32 %v878, %v901
        %v903 = vpop.f32.mrf.mxu0
        %904 = vdwg.mxu0
        %v905 = vpack.c.bf16 %v832, %v832
        %v906 = vpack.c.bf16 %v867, %v867
        %v908 = vsel %vm743, %v905, 0
        %v911 = vsel %vm743, %v906, 0
        %913 = vmatpush.bf16.xpose.msra.mxu0 0
        %914 = vmatpush.bf16.xpose.msra.mxu0 0
        %915 = vmatpush.bf16.xpose.msra.mxu0 0
        %916 = vmatpush.bf16.xpose.msra.mxu0 0
        %917 = vmatpush.bf16.xpose.msra.mxu0 0
        %918 = vmatpush.bf16.xpose.msra.mxu0 0
        %919 = vmatpush.bf16.xpose.msra.mxu0 0
        %920 = vmatpush.bf16.xpose.msra.mxu0 %v911
        %921 = vmatmul.bf16.gmra.mxu0 %v908
        %v922 = vpop.f32.mrf.mxu0
        %v923 = vadd.f32 0.0, %v922
        %v924 = vpop.f32.mrf.mxu0
        %925 = vdwg.mxu0
        %v926 = vmul.f32 %v923, 0.35355338
        %v927 = vsel %vm635, %v926, -1e+30
        %v928 = vsel %vm743, %v927, -inf
        %929 = vmax.xlane.f32.xlu0 %v928
        %v930 = vpop.xlane.xlu0 %929
        %v931 = vsub.f32 %v927, %v930
        %v932 = vmul.f32 %v931, 1.442695
        %v933 = vpow.pop %v932
        %v934 = vsel %vm743, %v933, 0.0
        %935 = vadd.xlane.f32.xlu0 %v934
        %v936 = vpop.xlane.xlu0 %935
        %v937 = vpack.c.bf16 %v933, %v933
        %v938 = vpack.c.bf16 %v902, %v902
        %v940 = vsel %vm743, %v937, 0
        %v943 = vsel %vm779, %v938, 0
        %945 = vmatpush.bf16.msra.mxu0 0
        %946 = vmatpush.bf16.msra.mxu0 0
        %947 = vmatpush.bf16.msra.mxu0 0
        %948 = vmatpush.bf16.msra.mxu0 0
        %949 = vmatpush.bf16.msra.mxu0 0
        %950 = vmatpush.bf16.msra.mxu0 0
        %951 = vmatpush.bf16.msra.mxu0 0
        %952 = vmatpush.bf16.msra.mxu0 %v943
        %953 = vmatmul.bf16.gmra.mxu0 %v940
        %v954 = vpop.f32.mrf.mxu0
        %v955 = vadd.f32 0.0, %v954
        %v956 = vpop.f32.mrf.mxu0
        %957 = vdwg.mxu0
        %v958 = vrcp.pop %v936
        %v959 = vmul.f32 %v955, %v958
        %v960 = vpack.c.bf16 %v959, %v959
        %s961 = scalar_lea.vmem %s9, 4
        %v962 = vld [vmem:[%s961] sm:$0xf]
        %v964 = vsel %vm743, %v960, 0
        %v967 = vsel %vm779, %v962, 0
        %969 = vmatpush.bf16.msra.mxu0 0
        %970 = vmatpush.bf16.msra.mxu0 0
        %971 = vmatpush.bf16.msra.mxu0 0
        %972 = vmatpush.bf16.msra.mxu0 0
        %973 = vmatpush.bf16.msra.mxu0 0
        %974 = vmatpush.bf16.msra.mxu0 0
        %975 = vmatpush.bf16.msra.mxu0 0
        %976 = vmatpush.bf16.msra.mxu0 %v967
        %977 = vmatmul.bf16.gmra.mxu0 %v964
        %v978 = vpop.f32.mrf.mxu0
        %v979 = vadd.f32 0.0, %v978
        %v980 = vpop.f32.mrf.mxu0
        %981 = vdwg.mxu0
        %v983 = vsel %vm743, %v798, 0
        %v986 = vsel %vm779, %v799, 0
        %988 = vmatpush.bf16.msra.mxu0 0
        %989 = vmatpush.bf16.msra.mxu0 0
        %990 = vmatpush.bf16.msra.mxu0 0
        %991 = vmatpush.bf16.msra.mxu0 0
        %992 = vmatpush.bf16.msra.mxu0 0
        %993 = vmatpush.bf16.msra.mxu0 0
        %994 = vmatpush.bf16.msra.mxu0 0
        %995 = vmatpush.bf16.msra.mxu0 %v986
        %996 = vmatmul.bf16.gmra.mxu0 %v983
        %v997 = vpop.f32.mrf.mxu0
        %v998 = vadd.f32 %v979, %v997
        %v999 = vpop.f32.mrf.mxu0
        %1000 = vdwg.mxu0
        %s1001 = scalar_lea.vmem %s3, 32
        %v1002 = vld [vmem:[%s1001] sm:$0xf]
        %v1003 = vld [vmem:[%s1001 + $0x4] sm:$0xf]
        %v1004 = vld [vmem:[%s1001 + $0x8] sm:$0xf]
        %v1005 = vld [vmem:[%s1001 + $0xc] sm:$0xf]
        %s1006 = scalar_lea.vmem %s4, 2
        %v1007 = vld [vmem:[%s1006] sm:$0x1]
        %v1009 = vperm.slane %v1007, 0
        %v1015 = vunpack.c.l.b16 %v1002
        %v1016 = vunpack.c.l.b16 %v1003
        %v1017 = vunpack.c.l.b16 %v1004
        %v1018 = vunpack.c.l.b16 %v1005
        %v1019 = vpack.c.b16 %v1016, %v1015
        %v1020 = vpack.c.b16 %v1018, %v1017
        %1023 = vmatpush.bf16.msra.mxu0 0
        %1024 = vmatpush.bf16.msra.mxu0 0
        %1025 = vmatpush.bf16.msra.mxu0 0
        %1026 = vmatpush.bf16.msra.mxu0 0
        %1027 = vmatpush.bf16.msra.mxu0 0
        %1028 = vmatpush.bf16.msra.mxu0 0
        %1029 = vmatpush.bf16.msra.mxu0 %v1020
        %1030 = vmatpush.bf16.msra.mxu0 %v1019
        %1031 = vmatmul.bf16.gmra.mxu0 %v657
        %v1032 = vpop.f32.mrf.mxu0
        %v1033 = vadd.f32 %v1009, %v1032
        %v1034 = vpop.f32.mrf.mxu0
        %1035 = vdwg.mxu0
        %s1036 = scalar_lea.vmem %s5, 32
        %v1037 = vld [vmem:[%s1036] sm:$0xf]
        %v1038 = vld [vmem:[%s1036 + $0x4] sm:$0xf]
        %v1039 = vld [vmem:[%s1036 + $0x8] sm:$0xf]
        %v1040 = vld [vmem:[%s1036 + $0xc] sm:$0xf]
        %s1041 = scalar_lea.vmem %s6, 2
        %v1042 = vld [vmem:[%s1041] sm:$0x1]
        %v1044 = vperm.slane %v1042, 0
        %v1050 = vunpack.c.l.b16 %v1037
        %v1051 = vunpack.c.l.b16 %v1038
        %v1052 = vunpack.c.l.b16 %v1039
        %v1053 = vunpack.c.l.b16 %v1040
        %v1054 = vpack.c.b16 %v1051, %v1050
        %v1055 = vpack.c.b16 %v1053, %v1052
        %1058 = vmatpush.bf16.msra.mxu0 0
        %1059 = vmatpush.bf16.msra.mxu0 0
        %1060 = vmatpush.bf16.msra.mxu0 0
        %1061 = vmatpush.bf16.msra.mxu0 0
        %1062 = vmatpush.bf16.msra.mxu0 0
        %1063 = vmatpush.bf16.msra.mxu0 0
        %1064 = vmatpush.bf16.msra.mxu0 %v1055
        %1065 = vmatpush.bf16.msra.mxu0 %v1054
        %1066 = vmatmul.bf16.gmra.mxu0 %v693
        %v1067 = vpop.f32.mrf.mxu0
        %v1068 = vadd.f32 %v1044, %v1067
        %v1069 = vpop.f32.mrf.mxu0
        %1070 = vdwg.mxu0
        %s1071 = scalar_lea.vmem %s7, 32
        %v1072 = vld [vmem:[%s1071] sm:$0xf]
        %v1073 = vld [vmem:[%s1071 + $0x4] sm:$0xf]
        %v1074 = vld [vmem:[%s1071 + $0x8] sm:$0xf]
        %v1075 = vld [vmem:[%s1071 + $0xc] sm:$0xf]
        %s1076 = scalar_lea.vmem %s8, 2
        %v1077 = vld [vmem:[%s1076] sm:$0x1]
        %v1079 = vperm.slane %v1077, 0
        %v1085 = vunpack.c.l.b16 %v1072
        %v1086 = vunpack.c.l.b16 %v1073
        %v1087 = vunpack.c.l.b16 %v1074
        %v1088 = vunpack.c.l.b16 %v1075
        %v1089 = vpack.c.b16 %v1086, %v1085
        %v1090 = vpack.c.b16 %v1088, %v1087
        %1093 = vmatpush.bf16.msra.mxu0 0
        %1094 = vmatpush.bf16.msra.mxu0 0
        %1095 = vmatpush.bf16.msra.mxu0 0
        %1096 = vmatpush.bf16.msra.mxu0 0
        %1097 = vmatpush.bf16.msra.mxu0 0
        %1098 = vmatpush.bf16.msra.mxu0 0
        %1099 = vmatpush.bf16.msra.mxu0 %v1090
        %1100 = vmatpush.bf16.msra.mxu0 %v1089
        %1101 = vmatmul.bf16.gmra.mxu0 %v693
        %v1102 = vpop.f32.mrf.mxu0
        %v1103 = vadd.f32 %v1079, %v1102
        %v1104 = vpop.f32.mrf.mxu0
        %1105 = vdwg.mxu0
        %v1106 = vpack.c.bf16 %v1033, %v1033
        %v1107 = vpack.c.bf16 %v1068, %v1068
        %v1109 = vsel %vm743, %v1106, 0
        %v1112 = vsel %vm743, %v1107, 0
        %1114 = vmatpush.bf16.xpose.msra.mxu0 0
        %1115 = vmatpush.bf16.xpose.msra.mxu0 0
        %1116 = vmatpush.bf16.xpose.msra.mxu0 0
        %1117 = vmatpush.bf16.xpose.msra.mxu0 0
        %1118 = vmatpush.bf16.xpose.msra.mxu0 0
        %1119 = vmatpush.bf16.xpose.msra.mxu0 0
        %1120 = vmatpush.bf16.xpose.msra.mxu0 0
        %1121 = vmatpush.bf16.xpose.msra.mxu0 %v1112
        %1122 = vmatmul.bf16.gmra.mxu0 %v1109
        %v1123 = vpop.f32.mrf.mxu0
        %v1124 = vadd.f32 0.0, %v1123
        %v1125 = vpop.f32.mrf.mxu0
        %1126 = vdwg.mxu0
        %v1127 = vmul.f32 %v1124, 0.35355338
        %v1128 = vsel %vm635, %v1127, -1e+30
        %v1129 = vsel %vm743, %v1128, -inf
        %1130 = vmax.xlane.f32.xlu0 %v1129
        %v1131 = vpop.xlane.xlu0 %1130
        %v1132 = vsub.f32 %v1128, %v1131
        %v1133 = vmul.f32 %v1132, 1.442695
        %v1134 = vpow.pop %v1133
        %v1135 = vsel %vm743, %v1134, 0.0
        %1136 = vadd.xlane.f32.xlu0 %v1135
        %v1137 = vpop.xlane.xlu0 %1136
        %v1138 = vpack.c.bf16 %v1134, %v1134
        %v1139 = vpack.c.bf16 %v1103, %v1103
        %v1141 = vsel %vm743, %v1138, 0
        %v1144 = vsel %vm779, %v1139, 0
        %1146 = vmatpush.bf16.msra.mxu0 0
        %1147 = vmatpush.bf16.msra.mxu0 0
        %1148 = vmatpush.bf16.msra.mxu0 0
        %1149 = vmatpush.bf16.msra.mxu0 0
        %1150 = vmatpush.bf16.msra.mxu0 0
        %1151 = vmatpush.bf16.msra.mxu0 0
        %1152 = vmatpush.bf16.msra.mxu0 0
        %1153 = vmatpush.bf16.msra.mxu0 %v1144
        %1154 = vmatmul.bf16.gmra.mxu0 %v1141
        %v1155 = vpop.f32.mrf.mxu0
        %v1156 = vadd.f32 0.0, %v1155
        %v1157 = vpop.f32.mrf.mxu0
        %1158 = vdwg.mxu0
        %v1159 = vrcp.pop %v1137
        %v1160 = vmul.f32 %v1156, %v1159
        %v1161 = vpack.c.bf16 %v1160, %v1160
        %s1162 = scalar_lea.vmem %s9, 8
        %v1163 = vld [vmem:[%s1162] sm:$0xf]
        %v1165 = vsel %vm743, %v1161, 0
        %v1168 = vsel %vm779, %v1163, 0
        %1170 = vmatpush.bf16.msra.mxu0 0
        %1171 = vmatpush.bf16.msra.mxu0 0
        %1172 = vmatpush.bf16.msra.mxu0 0
        %1173 = vmatpush.bf16.msra.mxu0 0
        %1174 = vmatpush.bf16.msra.mxu0 0
        %1175 = vmatpush.bf16.msra.mxu0 0
        %1176 = vmatpush.bf16.msra.mxu0 0
        %1177 = vmatpush.bf16.msra.mxu0 %v1168
        %1178 = vmatmul.bf16.gmra.mxu0 %v1165
        %v1179 = vpop.f32.mrf.mxu0
        %v1180 = vadd.f32 0.0, %v1179
        %v1181 = vpop.f32.mrf.mxu0
        %1182 = vdwg.mxu0
        %v1183 = vadd.f32 %v998, %v1180
        %s1184 = scalar_lea.vmem %s3, 48
        %v1185 = vld [vmem:[%s1184] sm:$0xf]
        %v1186 = vld [vmem:[%s1184 + $0x4] sm:$0xf]
        %v1187 = vld [vmem:[%s1184 + $0x8] sm:$0xf]
        %v1188 = vld [vmem:[%s1184 + $0xc] sm:$0xf]
        %s1189 = scalar_lea.vmem %s4, 3
        %v1190 = vld [vmem:[%s1189] sm:$0x1]
        %v1192 = vperm.slane %v1190, 0
        %v1198 = vunpack.c.l.b16 %v1185
        %v1199 = vunpack.c.l.b16 %v1186
        %v1200 = vunpack.c.l.b16 %v1187
        %v1201 = vunpack.c.l.b16 %v1188
        %v1202 = vpack.c.b16 %v1199, %v1198
        %v1203 = vpack.c.b16 %v1201, %v1200
        %1206 = vmatpush.bf16.msra.mxu0 0
        %1207 = vmatpush.bf16.msra.mxu0 0
        %1208 = vmatpush.bf16.msra.mxu0 0
        %1209 = vmatpush.bf16.msra.mxu0 0
        %1210 = vmatpush.bf16.msra.mxu0 0
        %1211 = vmatpush.bf16.msra.mxu0 0
        %1212 = vmatpush.bf16.msra.mxu0 %v1203
        %1213 = vmatpush.bf16.msra.mxu0 %v1202
        %1214 = vmatmul.bf16.gmra.mxu0 %v657
        %v1215 = vpop.f32.mrf.mxu0
        %v1216 = vadd.f32 %v1192, %v1215
        %v1217 = vpop.f32.mrf.mxu0
        %1218 = vdwg.mxu0
        %s1219 = scalar_lea.vmem %s5, 48
        %v1220 = vld [vmem:[%s1219] sm:$0xf]
        %v1221 = vld [vmem:[%s1219 + $0x4] sm:$0xf]
        %v1222 = vld [vmem:[%s1219 + $0x8] sm:$0xf]
        %v1223 = vld [vmem:[%s1219 + $0xc] sm:$0xf]
        %s1224 = scalar_lea.vmem %s6, 3
        %v1225 = vld [vmem:[%s1224] sm:$0x1]
        %v1227 = vperm.slane %v1225, 0
        %v1233 = vunpack.c.l.b16 %v1220
        %v1234 = vunpack.c.l.b16 %v1221
        %v1235 = vunpack.c.l.b16 %v1222
        %v1236 = vunpack.c.l.b16 %v1223
        %v1237 = vpack.c.b16 %v1234, %v1233
        %v1238 = vpack.c.b16 %v1236, %v1235
        %1241 = vmatpush.bf16.msra.mxu0 0
        %1242 = vmatpush.bf16.msra.mxu0 0
        %1243 = vmatpush.bf16.msra.mxu0 0
        %1244 = vmatpush.bf16.msra.mxu0 0
        %1245 = vmatpush.bf16.msra.mxu0 0
        %1246 = vmatpush.bf16.msra.mxu0 0
        %1247 = vmatpush.bf16.msra.mxu0 %v1238
        %1248 = vmatpush.bf16.msra.mxu0 %v1237
        %1249 = vmatmul.bf16.gmra.mxu0 %v693
        %v1250 = vpop.f32.mrf.mxu0
        %v1251 = vadd.f32 %v1227, %v1250
        %v1252 = vpop.f32.mrf.mxu0
        %1253 = vdwg.mxu0
        %s1254 = scalar_lea.vmem %s7, 48
        %v1255 = vld [vmem:[%s1254] sm:$0xf]
        %v1256 = vld [vmem:[%s1254 + $0x4] sm:$0xf]
        %v1257 = vld [vmem:[%s1254 + $0x8] sm:$0xf]
        %v1258 = vld [vmem:[%s1254 + $0xc] sm:$0xf]
        %s1259 = scalar_lea.vmem %s8, 3
        %v1260 = vld [vmem:[%s1259] sm:$0x1]
        %v1262 = vperm.slane %v1260, 0
        %v1268 = vunpack.c.l.b16 %v1255
        %v1269 = vunpack.c.l.b16 %v1256
        %v1270 = vunpack.c.l.b16 %v1257
        %v1271 = vunpack.c.l.b16 %v1258
        %v1272 = vpack.c.b16 %v1269, %v1268
        %v1273 = vpack.c.b16 %v1271, %v1270
        %1276 = vmatpush.bf16.msra.mxu0 0
        %1277 = vmatpush.bf16.msra.mxu0 0
        %1278 = vmatpush.bf16.msra.mxu0 0
        %1279 = vmatpush.bf16.msra.mxu0 0
        %1280 = vmatpush.bf16.msra.mxu0 0
        %1281 = vmatpush.bf16.msra.mxu0 0
        %1282 = vmatpush.bf16.msra.mxu0 %v1273
        %1283 = vmatpush.bf16.msra.mxu0 %v1272
        %1284 = vmatmul.bf16.gmra.mxu0 %v693
        %v1285 = vpop.f32.mrf.mxu0
        %v1286 = vadd.f32 %v1262, %v1285
        %v1287 = vpop.f32.mrf.mxu0
        %1288 = vdwg.mxu0
        %v1289 = vpack.c.bf16 %v1216, %v1216
        %v1290 = vpack.c.bf16 %v1251, %v1251
        %v1292 = vsel %vm743, %v1289, 0
        %v1295 = vsel %vm743, %v1290, 0
        %1297 = vmatpush.bf16.xpose.msra.mxu0 0
        %1298 = vmatpush.bf16.xpose.msra.mxu0 0
        %1299 = vmatpush.bf16.xpose.msra.mxu0 0
        %1300 = vmatpush.bf16.xpose.msra.mxu0 0
        %1301 = vmatpush.bf16.xpose.msra.mxu0 0
        %1302 = vmatpush.bf16.xpose.msra.mxu0 0
        %1303 = vmatpush.bf16.xpose.msra.mxu0 0
        %1304 = vmatpush.bf16.xpose.msra.mxu0 %v1295
        %1305 = vmatmul.bf16.gmra.mxu0 %v1292
        %v1306 = vpop.f32.mrf.mxu0
        %v1307 = vadd.f32 0.0, %v1306
        %v1308 = vpop.f32.mrf.mxu0
        %1309 = vdwg.mxu0
        %v1310 = vmul.f32 %v1307, 0.35355338
        %v1311 = vsel %vm635, %v1310, -1e+30
        %v1312 = vsel %vm743, %v1311, -inf
        %1313 = vmax.xlane.f32.xlu0 %v1312
        %v1314 = vpop.xlane.xlu0 %1313
        %v1315 = vsub.f32 %v1311, %v1314
        %v1316 = vmul.f32 %v1315, 1.442695
        %v1317 = vpow.pop %v1316
        %v1318 = vsel %vm743, %v1317, 0.0
        %1319 = vadd.xlane.f32.xlu0 %v1318
        %v1320 = vpop.xlane.xlu0 %1319
        %v1321 = vpack.c.bf16 %v1317, %v1317
        %v1322 = vpack.c.bf16 %v1286, %v1286
        %v1324 = vsel %vm743, %v1321, 0
        %v1327 = vsel %vm779, %v1322, 0
        %1329 = vmatpush.bf16.msra.mxu0 0
        %1330 = vmatpush.bf16.msra.mxu0 0
        %1331 = vmatpush.bf16.msra.mxu0 0
        %1332 = vmatpush.bf16.msra.mxu0 0
        %1333 = vmatpush.bf16.msra.mxu0 0
        %1334 = vmatpush.bf16.msra.mxu0 0
        %1335 = vmatpush.bf16.msra.mxu0 0
        %1336 = vmatpush.bf16.msra.mxu0 %v1327
        %1337 = vmatmul.bf16.gmra.mxu0 %v1324
        %v1338 = vpop.f32.mrf.mxu0
        %v1339 = vadd.f32 0.0, %v1338
        %v1340 = vpop.f32.mrf.mxu0
        %1341 = vdwg.mxu0
        %v1342 = vrcp.pop %v1320
        %v1343 = vmul.f32 %v1339, %v1342
        %v1344 = vpack.c.bf16 %v1343, %v1343
        %s1345 = scalar_lea.vmem %s9, 12
        %v1346 = vld [vmem:[%s1345] sm:$0xf]
        %v1348 = vsel %vm743, %v1344, 0
        %v1351 = vsel %vm779, %v1346, 0
        %1353 = vmatpush.bf16.msra.mxu0 0
        %1354 = vmatpush.bf16.msra.mxu0 0
        %1355 = vmatpush.bf16.msra.mxu0 0
        %1356 = vmatpush.bf16.msra.mxu0 0
        %1357 = vmatpush.bf16.msra.mxu0 0
        %1358 = vmatpush.bf16.msra.mxu0 0
        %1359 = vmatpush.bf16.msra.mxu0 0
        %1360 = vmatpush.bf16.msra.mxu0 %v1351
        %1361 = vmatmul.bf16.gmra.mxu0 %v1348
        %v1362 = vpop.f32.mrf.mxu0
        %v1363 = vadd.f32 0.0, %v1362
        %v1364 = vpop.f32.mrf.mxu0
        %1365 = vdwg.mxu0
        %v1366 = vadd.f32 %v1183, %v1363
        %v1367 = vadd.f32 %v561, %v1366
        %v1368 = vld [vmem:[%s10] sm:$0x1]
        %v1370 = vperm.slane %v1368, 0
        %v1372 = vadd.f32 %v1367, %v1370
        %v1373 = vld [vmem:[%s11] sm:$0x1]
        %v1374 = vld [vmem:[%s12] sm:$0x1]
        %v1375 = vsel %vm565, %v1372, 0.0
        %1376 = vadd.xlane.f32.xlu0 %v1375
        %v1377 = vpop.xlane.xlu0 %1376
        %v1378 = vmul.f32 %v1377, %v575
        %v1379 = vsub.f32 %v1372, %v1378
        %v1380 = vmul.f32 %v1379, %v1379
        %v1381 = vsel %vm565, %v1380, 0.0
        %1382 = vadd.xlane.f32.xlu0 %v1381
        %v1383 = vpop.xlane.xlu0 %1382
        %v1384 = vmul.f32 %v1383, %v575
        %v1385 = vadd.f32 %v1384, 1e-05
        %v1386 = vrsqrt.pop %v1385
        %v1387 = vmul.f32 %v1386, %v1385
        %v1388 = vmul.f32 %v1387, %v1386
        %v1389 = vmul.f32 0.5, %v1388
        %v1390 = vsub.f32 1.5, %v1389
        %v1391 = vmul.f32 %v1386, %v1390
        %vm1392 = vweird.f32 %v1385
        %vm1393 = vweird.f32 %v1386
        %vm1394 = vmor %vm1392, %vm1393
        %v1395 = vsel %vm1394, %v1386, %v1391
        %v1396 = vmul.f32 %v1379, %v1395
        %v1398 = vperm.slane %v1373, 0
        %v1400 = vmul.f32 %v1396, %v1398
        %v1402 = vperm.slane %v1374, 0
        %v1404 = vadd.f32 %v1400, %v1402
        %v1405 = vpack.c.bf16 %v1404, %v1404
        %v1406 = vld [vmem:[%s13] sm:$0xf]
        %v1407 = vld [vmem:[%s13 + $0x4] sm:$0xf]
        %v1408 = vld [vmem:[%s13 + $0x8] sm:$0xf]
        %v1409 = vld [vmem:[%s13 + $0xc] sm:$0xf]
        %v1410 = vld [vmem:[%s14] sm:$0x1]
        %v1412 = vperm.slane %v1410, 0
        %v1418 = vunpack.c.l.b16 %v1406
        %v1419 = vunpack.c.l.b16 %v1407
        %v1420 = vunpack.c.l.b16 %v1408
        %v1421 = vunpack.c.l.b16 %v1409
        %v1422 = vpack.c.b16 %v1419, %v1418
        %v1423 = vpack.c.b16 %v1421, %v1420
        %v1427 = vsel %vm565, %v1405, 0
        %1429 = vmatpush.bf16.msra.mxu0 0
        %1430 = vmatpush.bf16.msra.mxu0 0
        %1431 = vmatpush.bf16.msra.mxu0 0
        %1432 = vmatpush.bf16.msra.mxu0 0
        %1433 = vmatpush.bf16.msra.mxu0 0
        %1434 = vmatpush.bf16.msra.mxu0 0
        %1435 = vmatpush.bf16.msra.mxu0 %v1423
        %1436 = vmatpush.bf16.msra.mxu0 %v1422
        %1437 = vmatmul.bf16.gmra.mxu0 %v1427
        %v1438 = vpop.f32.mrf.mxu0
        %v1439 = vadd.f32 %v1412, %v1438
        %v1440 = vpop.f32.mrf.mxu0
        %1441 = vdwg.mxu0
        %v1442 = vmul.f32 %v1439, 0.5
        %v1443 = vmul.f32 %v1439, 0.044715
        %v1444 = vmul.f32 %v1443, %v1439
        %v1445 = vmul.f32 %v1444, %v1439
        %v1446 = vadd.f32 %v1439, %v1445
        %v1447 = vmul.f32 %v1446, 0.7978846
        %v1448 = vtanh.pop %v1447
        %v1449 = vadd.f32 %v1448, 1.0
        %v1450 = vmul.f32 %v1442, %v1449
        %v1451 = vpack.c.bf16 %v1450, %v1450
        %v1452 = vld [vmem:[%s15] sm:$0xf]
        %v1453 = vld [vmem:[%s15 + $0x4] sm:$0xf]
        %v1454 = vld [vmem:[%s15 + $0x8] sm:$0xf]
        %v1455 = vld [vmem:[%s15 + $0xc] sm:$0xf]
        %v1456 = vld [vmem:[%s15 + $0x10] sm:$0xf]
        %v1457 = vld [vmem:[%s15 + $0x14] sm:$0xf]
        %v1458 = vld [vmem:[%s15 + $0x18] sm:$0xf]
        %v1459 = vld [vmem:[%s15 + $0x1c] sm:$0xf]
        %v1460 = vld [vmem:[%s15 + $0x20] sm:$0xf]
        %v1461 = vld [vmem:[%s15 + $0x24] sm:$0xf]
        %v1462 = vld [vmem:[%s15 + $0x28] sm:$0xf]
        %v1463 = vld [vmem:[%s15 + $0x2c] sm:$0xf]
        %v1464 = vld [vmem:[%s15 + $0x30] sm:$0xf]
        %v1465 = vld [vmem:[%s15 + $0x34] sm:$0xf]
        %v1466 = vld [vmem:[%s15 + $0x38] sm:$0xf]
        %v1467 = vld [vmem:[%s15 + $0x3c] sm:$0xf]
        %v1468 = vld [vmem:[%s16] sm:$0x1]
        %v1470 = vperm.slane %v1468, 0
        %v1488 = vunpack.c.l.b16 %v1452
        %v1489 = vunpack.c.l.b16 %v1453
        %v1490 = vunpack.c.l.b16 %v1454
        %v1491 = vunpack.c.l.b16 %v1455
        %v1492 = vunpack.c.l.b16 %v1456
        %v1493 = vunpack.c.l.b16 %v1457
        %v1494 = vunpack.c.l.b16 %v1458
        %v1495 = vunpack.c.l.b16 %v1459
        %v1496 = vunpack.c.l.b16 %v1460
        %v1497 = vunpack.c.l.b16 %v1461
        %v1498 = vunpack.c.l.b16 %v1462
        %v1499 = vunpack.c.l.b16 %v1463
        %v1500 = vunpack.c.l.b16 %v1464
        %v1501 = vunpack.c.l.b16 %v1465
        %v1502 = vunpack.c.l.b16 %v1466
        %v1503 = vunpack.c.l.b16 %v1467
        %v1504 = vpack.c.b16 %v1489, %v1488
        %v1505 = vpack.c.b16 %v1491, %v1490
        %v1506 = vpack.c.b16 %v1493, %v1492
        %v1507 = vpack.c.b16 %v1495, %v1494
        %v1508 = vpack.c.b16 %v1497, %v1496
        %v1509 = vpack.c.b16 %v1499, %v1498
        %v1510 = vpack.c.b16 %v1501, %v1500
        %v1511 = vpack.c.b16 %v1503, %v1502
        %1520 = vmatpush.bf16.msra.mxu0 %v1511
        %1521 = vmatpush.bf16.msra.mxu0 %v1510
        %1522 = vmatpush.bf16.msra.mxu0 %v1509
        %1523 = vmatpush.bf16.msra.mxu0 %v1508
        %1524 = vmatpush.bf16.msra.mxu0 %v1507
        %1525 = vmatpush.bf16.msra.mxu0 %v1506
        %1526 = vmatpush.bf16.msra.mxu0 %v1505
        %1527 = vmatpush.bf16.msra.mxu0 %v1504
        %1528 = vmatmul.bf16.gmra.mxu0 %v1451
        %v1529 = vpop.f32.mrf.mxu0
        %v1530 = vadd.f32 %v1470, %v1529
        %v1531 = vpop.f32.mrf.mxu0
        %1532 = vdwg.mxu0
        %v1533 = vadd.f32 %v1372, %v1530
        %1534 = vst.msk [vmem:[%s553] sm:$0xff] %vm565, %v1533
        %s1535 = sand.u32 %s415, 1
        %s1536 = scalar_lea.sflag [#allocation3], %s1535
        %s1537 = sand.u32 %s415, 1
        %s1538 = smul.addr %s1537, 8
        %s1539 = scalar_lea.vmem [#allocation2], %s1538
        // Predicated region
        $region89: #{tpu_custom_call.1} parent=87 // pred_check
          %p1540 = pneg %p425
        $region90: #{tpu_custom_call.1} parent=87 // pred_check_branch
          %1542 = sbr.rel (%p1540) target = $region92
        $region91: #{tpu_custom_call.1} parent=87 // pred_region
          %1544 = vsyncadd %s1536, 0
          %s1545 = sadd.s32 %s36, %s35
          %s1546 = smul.addr %s1545, 8
          %s1547 = scalar_lea.hbm %s17, %s1546
          %s1549 = sshll.u32 %s1539, 4
          %s1550 = int_to_ptr.vmem [resolvable:$true] %s1549
          %s1551 = sshll.u32 %s1547, 4
          %s1552 = int_to_ptr.hbm [resolvable:$true] %s1551
          %1554 = dma.vmem_to_hbm [thread:$0]  %s1550, 128, %s1552, %s1536
        $region92: #{tpu_custom_call.1} parent=87 // pred_fallthru
          _
      $region88: #{tpu_custom_call.1} parent=5 // pred_fallthru
        _
      %p1555 = scmp.le.s32.totalorder 2, %s26
      // Predicated region
      $region93: #{tpu_custom_call.1} parent=5 // pred_check
        %p1556 = pneg %p1555
      $region94: #{tpu_custom_call.1} parent=5 // pred_check_branch
        %1558 = sbr.rel (%p1556) target = $region96
      $region95: #{tpu_custom_call.1} parent=5 // pred_region
        %s1559 = ssub.s32 %s26, 2
        // Predicated region
        $region97: #{tpu_custom_call.1} parent=95 // pred_check
          %p1560 = pneg %p431
        $region98: #{tpu_custom_call.1} parent=95 // pred_check_branch
          %1562 = sbr.rel (%p1560) target = $region100
        $region99: #{tpu_custom_call.1} parent=95 // pred_region
          %s1563 = sand.u32 %s416, 1
          %s1564 = scalar_lea.sflag [#allocation3], %s1563
          %s1565 = sand.u32 %s416, 1
          %s1566 = smul.addr %s1565, 8
          %s1567 = scalar_lea.vmem [#allocation2], %s1566
          %1569 = dma.done %s1564, 128
        $region100: #{tpu_custom_call.1} parent=95 // pred_fallthru
          _
      $region96: #{tpu_custom_call.1} parent=5 // pred_fallthru
        _
    $region6: #{tpu_custom_call.1} parent=1 // loop_footer
      %s30 = sadd.s32 1, %s26
    $region7: #{tpu_custom_call.1} parent=1 // loop_footer_branch
      %25 = sbr.rel target = $region3
    $region8: #{tpu_custom_call.1} parent=1 // loop_exit
      _
    %1570 = vsyncpa [#allocation3], 1
    %s1571 = scalar_lea.sflag [#allocation3], 1
    %1572 = vsyncpa %s1571, 1

</llo_original>
